<compile_context>
chip_gen: v6e
topology: v6e:2x2x1
jax: 0.10.0
libtpu: 0.0.40
codegen_flags: <defaults>
</compile_context>

<pallas_src>
import functools

import jax
import jax.numpy as jnp
from jax import lax
from jax.experimental import pallas as pl
from jax.experimental.pallas import tpu as pltpu

EPS = 1e-5

# Older JAX releases expose this as TPUCompilerParams.
_CompilerParams = getattr(pltpu, "CompilerParams", None) or getattr(
    pltpu, "TPUCompilerParams")


def _round_up(x, m):
    return ((x + m - 1) // m) * m


def _pick_row_tile(oh, owp1, target_pixels=256):
    """Largest divisor of `oh` with <= target_pixels tile pixels, preferring
    >= 2 row-blocks so each TensorCore gets pipelining depth."""
    limit = max(1, target_pixels // owp1)
    cands = [d for d in range(1, oh + 1) if oh % d == 0 and d <= limit] or [1]
    pref = [d for d in cands if oh // d >= 2]
    return max(pref or cands)


# ---------------------------------------------------------------------------
# Kernel 1: 3x3 stride-2 conv (ReLU already applied wrapper-side)
#           + per-tile masked BN partial statistics.
# ---------------------------------------------------------------------------
def _conv3x3_kernel(win_ref, wp_ref, ws_ref, mask_ref, y_ref, sum_ref, ssq_ref,
                    *, owp1, cin):
    """One (sample, output-row-block) tile.

    Refs (per grid step):
      win_ref : (TILE_ROWS, 4*Cin) bf16  halo window; channels = the four
                even/odd row/col subgrids [ee | eo | oe | oo] of the padded,
                ReLU'd input, flattened over (subgrid row, subgrid col)
      wp_ref  : (3, 2*Cin, Cmid) bf16    paired-tap slabs (kw=0,1 of row kh)
      ws_ref  : (3, Cin, Cmid)   bf16    single-tap slabs (kw=2 of row kh)
      mask_ref: (TPpad, 1) f32           1 for real output pixels, 0 otherwise
      y_ref   : (TPpad, Cmid) bf16       conv output tile
      sum_ref : (1, Cmid) f32            masked per-tile channel sum
      ssq_ref : (1, Cmid) f32            masked per-tile channel sum-of-squares

    Every tap is a *static* contiguous slice of the window followed by one
    bf16 MXU matmul accumulated in f32.
    """
    tppad, cmid = y_ref.shape
    c2 = 2 * cin

    acc = jnp.zeros((tppad, cmid), jnp.float32)

    # Paired taps (kw=0 and kw=1 of stencil row kh): K = 2*Cin matmuls.
    for r, (shift, col) in enumerate(((0, 0), (0, c2), (owp1, 0))):
        a = win_ref[pl.ds(shift, tppad), pl.ds(col, c2)]
        acc = acc + jnp.dot(a, wp_ref[r], preferred_element_type=jnp.float32)

    # Right-column taps (kw=2): K = Cin matmuls on the even-col halves.
    for r, (shift, col) in enumerate(((1, 0), (1, c2), (owp1 + 1, 0))):
        a = win_ref[pl.ds(shift, tppad), pl.ds(col, cin)]
        acc = acc + jnp.dot(a, ws_ref[r], preferred_element_type=jnp.float32)

    y_ref[...] = acc.astype(y_ref.dtype)            # bf16 intermediate
    masked = acc * mask_ref[...]                    # drop wrap/pad pixels
    sum_ref[...] = jnp.sum(masked, axis=0, keepdims=True)
    ssq_ref[...] = jnp.sum(masked * acc, axis=0, keepdims=True)


# ---------------------------------------------------------------------------
# Kernel 2: fused BatchNorm (precomputed scale/bias) + ReLU + 1x1 conv.
# ---------------------------------------------------------------------------
def _bn_relu_conv1x1_kernel(y_ref, scale_ref, bias_ref, w2_ref, o_ref):
    z = y_ref[...].astype(jnp.float32) * scale_ref[...] + bias_ref[...]
    z = jnp.maximum(z, 0.0).astype(jnp.bfloat16)    # ReLU, bf16 MXU feed
    o_ref[...] = jnp.dot(z, w2_ref[...], preferred_element_type=jnp.float32)


# ---------------------------------------------------------------------------
# Wrapper: layout plumbing + BN statistic finalization.
# ---------------------------------------------------------------------------
@jax.jit
def relu_conv_bn_relu_conv(x_nchw, w1, gamma, beta, w2):
    N, Cin, H, W = x_nchw.shape
    Cmid = w1.shape[0]
    Cout = w2.shape[0]
    assert H % 2 == 0 and W % 2 == 0, "3x3/stride-2/pad-1 path assumes even H, W"
    OH, OW = H // 2, W // 2
    OWp1 = OW + 1
    C4 = 4 * Cin

    TOH = _pick_row_tile(OH, OWp1)                  # output rows per tile
    n_b = OH // TOH
    TP = TOH * OWp1                                 # tile pixels incl. wrap col
    TPpad = _round_up(TP, 8)                        # sublane-aligned tile rows
    TILE_ROWS = _round_up(OWp1 + 1 + TPpad, 8)      # window rows incl. halo
    P = (OH + 1) * OWp1                             # flattened subgrid pixels
    Ppad = (n_b - 1) * TP + TILE_ROWS               # covers the last halo read
    assert Ppad >= P
    assert TILE_ROWS >= OWp1 + 1 + TPpad            # halo slack is sufficient

    # ---- XLA-side prep: ReLU + bf16 (hoisted), space-to-depth split into one
    #      channel-concatenated window tensor, per-tile halo windows.
    x = jnp.transpose(x_nchw, (0, 2, 3, 1))                     # NHWC
    x = jnp.maximum(x, 0.0).astype(jnp.bfloat16)                # fused ReLU+cast
    xpad = jnp.pad(x, ((0, 0), (1, 1), (1, 1), (0, 0)))         # (N, 2OH+2, 2OW+2, C)
    sub = jnp.concatenate(
        [xpad[:, 0::2, 0::2, :], xpad[:, 0::2, 1::2, :],
         xpad[:, 1::2, 0::2, :], xpad[:, 1::2, 1::2, :]],
        axis=-1)                                                # (N, OH+1, OW+1, 4C)
    sub = sub.reshape(N, P, C4)
    sub = jnp.pad(sub, ((0, 0), (0, Ppad - P), (0, 0)))
    win = jnp.stack(
        [lax.slice_in_dim(sub, b * TP, b * TP + TILE_ROWS, axis=1)
         for b in range(n_b)], axis=1)                          # (N, n_b, TILE_ROWS, 4C)

    # conv weights: OIHW -> paired (kw=0,1) K=2*Cin slabs + single (kw=2) slabs.
    w1h = jnp.transpose(w1, (2, 3, 1, 0))                       # (3, 3, Cin, Cmid)
    wpair = jnp.concatenate([w1h[:, 0, :, :], w1h[:, 1, :, :]],
                            axis=1).astype(jnp.bfloat16)        # (3, 2Cin, Cmid)
    wsingle = w1h[:, 2, :, :].astype(jnp.bfloat16)              # (3, Cin, Cmid)
    w2m = jnp.transpose(w2.reshape(Cout, Cmid), (1, 0)).astype(jnp.bfloat16)

    # 1.0 for real output pixels, 0.0 for wrap-column / pad-row pixels.
    pix = jnp.arange(TPpad)
    mask = (((pix % OWp1) < OW) & (pix < TP)).astype(jnp.float32).reshape(TPpad, 1)

    y1, sums, ssqs = pl.pallas_call(
        functools.partial(_conv3x3_kernel, owp1=OWp1, cin=Cin),
        out_shape=(
            jax.ShapeDtypeStruct((N, n_b * TPpad, Cmid), jnp.bfloat16),
            jax.ShapeDtypeStruct((N, n_b, 1, Cmid), jnp.float32),
            jax.ShapeDtypeStruct((N, n_b, 1, Cmid), jnp.float32),
        ),
        grid=(N, n_b),
        in_specs=[
            pl.BlockSpec((None, None, TILE_ROWS, C4), lambda n, b: (n, b, 0, 0)),
            pl.BlockSpec((3, 2 * Cin, Cmid), lambda n, b: (0, 0, 0)),  # resident
            pl.BlockSpec((3, Cin, Cmid), lambda n, b: (0, 0, 0)),      # resident
            pl.BlockSpec((TPpad, 1), lambda n, b: (0, 0)),             # resident
        ],
        out_specs=(
            pl.BlockSpec((None, TPpad, Cmid), lambda n, b: (n, b, 0)),
            pl.BlockSpec((None, None, 1, Cmid), lambda n, b: (n, b, 0, 0)),
            pl.BlockSpec((None, None, 1, Cmid), lambda n, b: (n, b, 0, 0)),
        ),
        compiler_params=_CompilerParams(
            dimension_semantics=("parallel", "parallel")),
    )(win, wpair, wsingle, mask)

    # ---- BN batch statistics (training mode, biased variance) -- tiny vectors.
    # TODO(synk): running_mean/var momentum update is a training-time buffer
    # side effect not part of the returned tensor; omitted.
    cnt = float(N * OH * OW)
    mean = jnp.sum(sums, axis=(0, 1, 2)) / cnt
    var = jnp.maximum(jnp.sum(ssqs, axis=(0, 1, 2)) / cnt - mean * mean, 0.0)
    scale = gamma * lax.rsqrt(var + EPS)
    bias = beta - mean * scale

    out_flat = pl.pallas_call(
        _bn_relu_conv1x1_kernel,
        out_shape=jax.ShapeDtypeStruct((N, n_b * TPpad, Cout), jnp.float32),
        grid=(N, n_b),
        in_specs=[
            pl.BlockSpec((None, TPpad, Cmid), lambda n, b: (n, b, 0)),
            pl.BlockSpec((1, Cmid), lambda n, b: (0, 0)),              # resident
            pl.BlockSpec((1, Cmid), lambda n, b: (0, 0)),              # resident
            pl.BlockSpec((Cmid, Cout), lambda n, b: (0, 0)),           # resident
        ],
        out_specs=pl.BlockSpec((None, TPpad, Cout), lambda n, b: (n, b, 0)),
        compiler_params=_CompilerParams(
            dimension_semantics=("parallel", "parallel")),
    )(y1, scale.reshape(1, Cmid), bias.reshape(1, Cmid), w2m)

    # strip pad rows / wrap columns; back to NCHW to match the PyTorch module.
    # TODO(synk): keep NHWC end-to-end if the surrounding model can take it;
    # the final transpose is an extra pass over the largest tensor here.
    out = out_flat.reshape(N, n_b, TPpad, Cout)[:, :, :TP, :]
    out = out.reshape(N, n_b, TOH, OWp1, Cout)[:, :, :, :OW, :]
    out = out.reshape(N, OH, OW, Cout)
    return jnp.transpose(out, (0, 3, 1, 2))


# ---------------------------------------------------------------------------
# Pure-JAX f32 reference (correctness check only)
# ---------------------------------------------------------------------------
def reference(x_nchw, w1, gamma, beta, w2):
    x = jnp.transpose(x_nchw, (0, 2, 3, 1))
    xr = jnp.maximum(x, 0.0)
    w1h = jnp.transpose(w1, (2, 3, 1, 0))  # HWIO
    y = lax.conv_general_dilated(xr, w1h, (2, 2), ((1, 1), (1, 1)),
                                 dimension_numbers=("NHWC", "HWIO", "NHWC"))
    mean = jnp.mean(y, axis=(0, 1, 2))
    var = jnp.mean((y - mean) ** 2, axis=(0, 1, 2))
    z = (y - mean) * (gamma / jnp.sqrt(var + EPS)) + beta
    z = jnp.maximum(z, 0.0)
    w2h = jnp.transpose(w2, (2, 3, 1, 0))
    o = lax.conv_general_dilated(z, w2h, (1, 1), ((0, 0), (0, 0)),
                                 dimension_numbers=("NHWC", "HWIO", "NHWC"))
    return jnp.transpose(o, (0, 3, 1, 2))


if __name__ == "__main__":
    # Channel counts are fixed by the module (128 -> 128 -> 512); keep spatial
    # size / batch small for the demo (module's real size is 1x128x56x56).
    N, CIN, H, W = 2, 128, 16, 16
    CMID, COUT = 128, 512

    key = jax.random.PRNGKey(0)
    kx, kw1, kg, kb, kw2 = jax.random.split(key, 5)

    x = jax.random.normal(kx, (N, CIN, H, W), dtype=jnp.float32)
    w1 = jax.random.normal(kw1, (CMID, CIN, 3, 3), dtype=jnp.float32) * 0.05
    gamma = 1.0 + 0.1 * jax.random.normal(kg, (CMID,), dtype=jnp.float32)
    beta = 0.1 * jax.random.normal(kb, (CMID,), dtype=jnp.float32)
    w2 = jax.random.normal(kw2, (COUT, CMID, 1, 1), dtype=jnp.float32) * 0.05

    out = jax.block_until_ready(relu_conv_bn_relu_conv(x, w1, gamma, beta, w2))
    ref = jax.block_until_ready(reference(x, w1, gamma, beta, w2))

    assert out.shape == (N, COUT, H // 2, W // 2), out.shape
    # bf16 MXU feeds + bf16 y1 intermediate vs an all-f32 reference.
    max_err = float(jnp.max(jnp.abs(out - ref)))
    assert jnp.allclose(out, ref, rtol=3e-2, atol=3e-2), max_err

    print("KERNEL_OK")
</pallas_src>

<mosaic_0001>
module attributes {stable_mosaic.version = 11 : i64} {
  func.func @_bn_relu_conv1x1_kernel(%arg0: i32, %arg1: i32, %arg2: memref<1x40x128xbf16, #tpu.memory_space<vmem>>, %arg3: memref<1x128xf32, #tpu.memory_space<vmem>>, %arg4: memref<1x128xf32, #tpu.memory_space<vmem>>, %arg5: memref<128x512xbf16, #tpu.memory_space<vmem>>, %arg6: memref<1x40x512xf32, #tpu.memory_space<vmem>>) attributes {dimension_semantics = [#tpu.dimension_semantics<parallel>, #tpu.dimension_semantics<parallel>], iteration_bounds = array<i64: 2, 2>, scalar_prefetch = 0 : i64, scratch_operands = 0 : i64, tpu.core_type = #tpu.core_type<tc>, window_params = [{transform_indices = @transform_0, window_bounds = array<i64: 1, 40, 128>}, {pipeline_mode = #tpu.pipeline_mode<synchronous>, transform_indices = @transform_1, window_bounds = array<i64: 1, 128>}, {pipeline_mode = #tpu.pipeline_mode<synchronous>, transform_indices = @transform_2, window_bounds = array<i64: 1, 128>}, {pipeline_mode = #tpu.pipeline_mode<synchronous>, transform_indices = @transform_3, window_bounds = array<i64: 128, 512>}, {transform_indices = @transform_4, window_bounds = array<i64: 1, 40, 512>}]} {
    %c0 = arith.constant 0 : index
    %c0_0 = arith.constant 0 : index
    %c0_1 = arith.constant 0 : index
    %0 = vector.load %arg2[%c0, %c0_0, %c0_1] : memref<1x40x128xbf16, #tpu.memory_space<vmem>>, vector<1x40x128xbf16>
    %1 = vector.shape_cast %0 : vector<1x40x128xbf16> to vector<40x128xbf16>
    %2 = arith.extf %1 : vector<40x128xbf16> to vector<40x128xf32>
    %c0_2 = arith.constant 0 : index
    %c0_3 = arith.constant 0 : index
    %3 = vector.load %arg3[%c0_2, %c0_3] : memref<1x128xf32, #tpu.memory_space<vmem>>, vector<1x128xf32>
    %4 = vector.broadcast %3 : vector<1x128xf32> to vector<40x128xf32>
    %5 = arith.mulf %2, %4 : vector<40x128xf32>
    %c0_4 = arith.constant 0 : index
    %c0_5 = arith.constant 0 : index
    %6 = vector.load %arg4[%c0_4, %c0_5] : memref<1x128xf32, #tpu.memory_space<vmem>>, vector<1x128xf32>
    %7 = vector.broadcast %6 : vector<1x128xf32> to vector<40x128xf32>
    %8 = arith.addf %5, %7 : vector<40x128xf32>
    %cst = arith.constant 0.000000e+00 : f32
    %9 = vector.broadcast %cst : f32 to vector<40x128xf32>
    %10 = arith.maximumf %8, %9 : vector<40x128xf32>
    %11 = arith.truncf %10 : vector<40x128xf32> to vector<40x128xbf16>
    %c0_6 = arith.constant 0 : index
    %c0_7 = arith.constant 0 : index
    %12 = vector.load %arg5[%c0_6, %c0_7] : memref<128x512xbf16, #tpu.memory_space<vmem>>, vector<128x512xbf16>
    %cst_8 = arith.constant dense<0.000000e+00> : vector<40x512xf32>
    %13 = tpu.matmul %11, %12, %cst_8 {dimension_numbers = #tpu.dot_dimension_numbers<[1], [0], [0], [1], [0, 0, 1, 1], [], []>} : vector<40x128xbf16>, vector<128x512xbf16>, vector<40x512xf32> -> vector<40x512xf32>
    %c0_9 = arith.constant 0 : index
    %c0_10 = arith.constant 0 : index
    %c0_11 = arith.constant 0 : index
    %14 = vector.load %arg6[%c0_9, %c0_10, %c0_11] : memref<1x40x512xf32, #tpu.memory_space<vmem>>, vector<1x40x512xf32>
    %15 = vector.shape_cast %14 : vector<1x40x512xf32> to vector<40x512xf32>
    %16 = vector.shape_cast %13 : vector<40x512xf32> to vector<1x40x512xf32>
    tpu.vector_store %arg6[%c0_9, %c0_10, %c0_11], %16 {strides = array<i32>} : memref<1x40x512xf32, #tpu.memory_space<vmem>>, vector<1x40x512xf32>,
    return
  }
  func.func @transform_0(%arg0: i32, %arg1: i32) -> (i32, i32, i32) {
    %c0_i32 = arith.constant 0 : i32
    %c0_i32_0 = arith.constant 0 : i32
    return %arg0, %arg1, %c0_i32 : i32, i32, i32
  }
  func.func @transform_1(%arg0: i32, %arg1: i32) -> (i32, i32) {
    %c0_i32 = arith.constant 0 : i32
    %c0_i32_0 = arith.constant 0 : i32
    %c0_i32_1 = arith.constant 0 : i32
    return %c0_i32, %c0_i32_0 : i32, i32
  }
  func.func @transform_2(%arg0: i32, %arg1: i32) -> (i32, i32) {
    %c0_i32 = arith.constant 0 : i32
    %c0_i32_0 = arith.constant 0 : i32
    %c0_i32_1 = arith.constant 0 : i32
    return %c0_i32, %c0_i32_0 : i32, i32
  }
  func.func @transform_3(%arg0: i32, %arg1: i32) -> (i32, i32) {
    %c0_i32 = arith.constant 0 : i32
    %c0_i32_0 = arith.constant 0 : i32
    %c0_i32_1 = arith.constant 0 : i32
    return %c0_i32, %c0_i32_0 : i32, i32
  }
  func.func @transform_4(%arg0: i32, %arg1: i32) -> (i32, i32, i32) {
    %c0_i32 = arith.constant 0 : i32
    %c0_i32_0 = arith.constant 0 : i32
    return %arg0, %arg1, %c0_i32 : i32, i32, i32
  }
}

module attributes {stable_mosaic.version = 11 : i64} {
  func.func @_conv3x3_kernel(%arg0: i32, %arg1: i32, %arg2: memref<1x1x56x512xbf16, #tpu.memory_space<vmem>>, %arg3: memref<3x256x128xbf16, #tpu.memory_space<vmem>>, %arg4: memref<3x128x128xbf16, #tpu.memory_space<vmem>>, %arg5: memref<40x1xf32, #tpu.memory_space<vmem>>, %arg6: memref<1x40x128xbf16, #tpu.memory_space<vmem>>, %arg7: memref<1x1x1x128xf32, #tpu.memory_space<vmem>>, %arg8: memref<1x1x1x128xf32, #tpu.memory_space<vmem>>) attributes {dimension_semantics = [#tpu.dimension_semantics<parallel>, #tpu.dimension_semantics<parallel>], iteration_bounds = array<i64: 2, 2>, scalar_prefetch = 0 : i64, scratch_operands = 0 : i64, tpu.core_type = #tpu.core_type<tc>, window_params = [{transform_indices = @transform_0, window_bounds = array<i64: 1, 1, 56, 512>}, {pipeline_mode = #tpu.pipeline_mode<synchronous>, transform_indices = @transform_1, window_bounds = array<i64: 3, 256, 128>}, {pipeline_mode = #tpu.pipeline_mode<synchronous>, transform_indices = @transform_2, window_bounds = array<i64: 3, 128, 128>}, {pipeline_mode = #tpu.pipeline_mode<synchronous>, transform_indices = @transform_3, window_bounds = array<i64: 40, 1>}, {transform_indices = @transform_4, window_bounds = array<i64: 1, 40, 128>}, {transform_indices = @transform_5, window_bounds = array<i64: 1, 1, 1, 128>}, {transform_indices = @transform_6, window_bounds = array<i64: 1, 1, 1, 128>}]} {
    %cst = arith.constant 0.000000e+00 : f32
    %0 = vector.broadcast %cst : f32 to vector<40x128xf32>
    %c0 = arith.constant 0 : index
    %c0_0 = arith.constant 0 : index
    %c0_1 = arith.constant 0 : index
    %c0_2 = arith.constant 0 : index
    %1 = vector.load %arg2[%c0, %c0_0, %c0_1, %c0_2] : memref<1x1x56x512xbf16, #tpu.memory_space<vmem>>, vector<1x1x40x256xbf16>
    %2 = vector.shape_cast %1 : vector<1x1x40x256xbf16> to vector<40x256xbf16>
    %c0_3 = arith.constant 0 : index
    %c0_4 = arith.constant 0 : index
    %c0_5 = arith.constant 0 : index
    %3 = vector.load %arg3[%c0_3, %c0_4, %c0_5] : memref<3x256x128xbf16, #tpu.memory_space<vmem>>, vector<1x256x128xbf16>
    %4 = vector.shape_cast %3 : vector<1x256x128xbf16> to vector<256x128xbf16>
    %cst_6 = arith.constant dense<0.000000e+00> : vector<40x128xf32>
    %5 = tpu.matmul %2, %4, %cst_6 {dimension_numbers = #tpu.dot_dimension_numbers<[1], [0], [0], [1], [0, 0, 1, 1], [], []>} : vector<40x256xbf16>, vector<256x128xbf16>, vector<40x128xf32> -> vector<40x128xf32>
    %6 = arith.addf %0, %5 : vector<40x128xf32>
    %c0_7 = arith.constant 0 : index
    %c0_8 = arith.constant 0 : index
    %c0_9 = arith.constant 0 : index
    %c256 = arith.constant 256 : index
    %7 = vector.load %arg2[%c0_7, %c0_8, %c0_9, %c256] : memref<1x1x56x512xbf16, #tpu.memory_space<vmem>>, vector<1x1x40x256xbf16>
    %8 = vector.shape_cast %7 : vector<1x1x40x256xbf16> to vector<40x256xbf16>
    %c1 = arith.constant 1 : index
    %c0_10 = arith.constant 0 : index
    %c0_11 = arith.constant 0 : index
    %9 = vector.load %arg3[%c1, %c0_10, %c0_11] : memref<3x256x128xbf16, #tpu.memory_space<vmem>>, vector<1x256x128xbf16>
    %10 = vector.shape_cast %9 : vector<1x256x128xbf16> to vector<256x128xbf16>
    %cst_12 = arith.constant dense<0.000000e+00> : vector<40x128xf32>
    %11 = tpu.matmul %8, %10, %cst_12 {dimension_numbers = #tpu.dot_dimension_numbers<[1], [0], [0], [1], [0, 0, 1, 1], [], []>} : vector<40x256xbf16>, vector<256x128xbf16>, vector<40x128xf32> -> vector<40x128xf32>
    %12 = arith.addf %6, %11 : vector<40x128xf32>
    %c0_13 = arith.constant 0 : index
    %c0_14 = arith.constant 0 : index
    %c9 = arith.constant 9 : index
    %c0_15 = arith.constant 0 : index
    %13 = vector.load %arg2[%c0_13, %c0_14, %c9, %c0_15] : memref<1x1x56x512xbf16, #tpu.memory_space<vmem>>, vector<1x1x40x256xbf16>
    %14 = vector.shape_cast %13 : vector<1x1x40x256xbf16> to vector<40x256xbf16>
    %c2 = arith.constant 2 : index
    %c0_16 = arith.constant 0 : index
    %c0_17 = arith.constant 0 : index
    %15 = vector.load %arg3[%c2, %c0_16, %c0_17] : memref<3x256x128xbf16, #tpu.memory_space<vmem>>, vector<1x256x128xbf16>
    %16 = vector.shape_cast %15 : vector<1x256x128xbf16> to vector<256x128xbf16>
    %cst_18 = arith.constant dense<0.000000e+00> : vector<40x128xf32>
    %17 = tpu.matmul %14, %16, %cst_18 {dimension_numbers = #tpu.dot_dimension_numbers<[1], [0], [0], [1], [0, 0, 1, 1], [], []>} : vector<40x256xbf16>, vector<256x128xbf16>, vector<40x128xf32> -> vector<40x128xf32>
    %18 = arith.addf %12, %17 : vector<40x128xf32>
    %c0_19 = arith.constant 0 : index
    %c0_20 = arith.constant 0 : index
    %c1_21 = arith.constant 1 : index
    %c0_22 = arith.constant 0 : index
    %19 = vector.load %arg2[%c0_19, %c0_20, %c1_21, %c0_22] : memref<1x1x56x512xbf16, #tpu.memory_space<vmem>>, vector<1x1x40x128xbf16>
    %20 = vector.shape_cast %19 : vector<1x1x40x128xbf16> to vector<40x128xbf16>
    %c0_23 = arith.constant 0 : index
    %c0_24 = arith.constant 0 : index
    %c0_25 = arith.constant 0 : index
    %21 = vector.load %arg4[%c0_23, %c0_24, %c0_25] : memref<3x128x128xbf16, #tpu.memory_space<vmem>>, vector<1x128x128xbf16>
    %22 = vector.shape_cast %21 : vector<1x128x128xbf16> to vector<128x128xbf16>
    %cst_26 = arith.constant dense<0.000000e+00> : vector<40x128xf32>
    %23 = tpu.matmul %20, %22, %cst_26 {dimension_numbers = #tpu.dot_dimension_numbers<[1], [0], [0], [1], [0, 0, 1, 1], [], []>} : vector<40x128xbf16>, vector<128x128xbf16>, vector<40x128xf32> -> vector<40x128xf32>
    %24 = arith.addf %18, %23 : vector<40x128xf32>
    %c0_27 = arith.constant 0 : index
    %c0_28 = arith.constant 0 : index
    %c1_29 = arith.constant 1 : index
    %c256_30 = arith.constant 256 : index
    %25 = vector.load %arg2[%c0_27, %c0_28, %c1_29, %c256_30] : memref<1x1x56x512xbf16, #tpu.memory_space<vmem>>, vector<1x1x40x128xbf16>
    %26 = vector.shape_cast %25 : vector<1x1x40x128xbf16> to vector<40x128xbf16>
    %c1_31 = arith.constant 1 : index
    %c0_32 = arith.constant 0 : index
    %c0_33 = arith.constant 0 : index
    %27 = vector.load %arg4[%c1_31, %c0_32, %c0_33] : memref<3x128x128xbf16, #tpu.memory_space<vmem>>, vector<1x128x128xbf16>
    %28 = vector.shape_cast %27 : vector<1x128x128xbf16> to vector<128x128xbf16>
    %cst_34 = arith.constant dense<0.000000e+00> : vector<40x128xf32>
    %29 = tpu.matmul %26, %28, %cst_34 {dimension_numbers = #tpu.dot_dimension_numbers<[1], [0], [0], [1], [0, 0, 1, 1], [], []>} : vector<40x128xbf16>, vector<128x128xbf16>, vector<40x128xf32> -> vector<40x128xf32>
    %30 = arith.addf %24, %29 : vector<40x128xf32>
    %c0_35 = arith.constant 0 : index
    %c0_36 = arith.constant 0 : index
    %c10 = arith.constant 10 : index
    %c0_37 = arith.constant 0 : index
    %31 = vector.load %arg2[%c0_35, %c0_36, %c10, %c0_37] : memref<1x1x56x512xbf16, #tpu.memory_space<vmem>>, vector<1x1x40x128xbf16>
    %32 = vector.shape_cast %31 : vector<1x1x40x128xbf16> to vector<40x128xbf16>
    %c2_38 = arith.constant 2 : index
    %c0_39 = arith.constant 0 : index
    %c0_40 = arith.constant 0 : index
    %33 = vector.load %arg4[%c2_38, %c0_39, %c0_40] : memref<3x128x128xbf16, #tpu.memory_space<vmem>>, vector<1x128x128xbf16>
    %34 = vector.shape_cast %33 : vector<1x128x128xbf16> to vector<128x128xbf16>
    %cst_41 = arith.constant dense<0.000000e+00> : vector<40x128xf32>
    %35 = tpu.matmul %32, %34, %cst_41 {dimension_numbers = #tpu.dot_dimension_numbers<[1], [0], [0], [1], [0, 0, 1, 1], [], []>} : vector<40x128xbf16>, vector<128x128xbf16>, vector<40x128xf32> -> vector<40x128xf32>
    %36 = arith.addf %30, %35 : vector<40x128xf32>
    %37 = arith.truncf %36 : vector<40x128xf32> to vector<40x128xbf16>
    %c0_42 = arith.constant 0 : index
    %c0_43 = arith.constant 0 : index
    %c0_44 = arith.constant 0 : index
    %38 = vector.load %arg6[%c0_42, %c0_43, %c0_44] : memref<1x40x128xbf16, #tpu.memory_space<vmem>>, vector<1x40x128xbf16>
    %39 = vector.shape_cast %38 : vector<1x40x128xbf16> to vector<40x128xbf16>
    %40 = vector.shape_cast %37 : vector<40x128xbf16> to vector<1x40x128xbf16>
    tpu.vector_store %arg6[%c0_42, %c0_43, %c0_44], %40 {strides = array<i32>} : memref<1x40x128xbf16, #tpu.memory_space<vmem>>, vector<1x40x128xbf16>,
    %c0_45 = arith.constant 0 : index
    %c0_46 = arith.constant 0 : index
    %41 = vector.load %arg5[%c0_45, %c0_46] : memref<40x1xf32, #tpu.memory_space<vmem>>, vector<40x1xf32>
    %42 = vector.broadcast %41 : vector<40x1xf32> to vector<40x128xf32>
    %43 = arith.mulf %36, %42 : vector<40x128xf32>
    %cst_47 = arith.constant dense<0.000000e+00> : vector<128xf32>
    %44 = vector.multi_reduction <add>, %43, %cst_47 [0] : vector<40x128xf32> to vector<128xf32>
    %45 = vector.shape_cast %44 : vector<128xf32> to vector<1x128xf32>
    %c0_48 = arith.constant 0 : index
    %c0_49 = arith.constant 0 : index
    %c0_50 = arith.constant 0 : index
    %c0_51 = arith.constant 0 : index
    %46 = vector.load %arg7[%c0_48, %c0_49, %c0_50, %c0_51] : memref<1x1x1x128xf32, #tpu.memory_space<vmem>>, vector<1x1x1x128xf32>
    %47 = vector.shape_cast %46 : vector<1x1x1x128xf32> to vector<1x128xf32>
    %48 = vector.shape_cast %45 : vector<1x128xf32> to vector<1x1x1x128xf32>
    tpu.vector_store %arg7[%c0_48, %c0_49, %c0_50, %c0_51], %48 {strides = array<i32>} : memref<1x1x1x128xf32, #tpu.memory_space<vmem>>, vector<1x1x1x128xf32>,
    %49 = arith.mulf %43, %36 : vector<40x128xf32>
    %cst_52 = arith.constant dense<0.000000e+00> : vector<128xf32>
    %50 = vector.multi_reduction <add>, %49, %cst_52 [0] : vector<40x128xf32> to vector<128xf32>
    %51 = vector.shape_cast %50 : vector<128xf32> to vector<1x128xf32>
    %c0_53 = arith.constant 0 : index
    %c0_54 = arith.constant 0 : index
    %c0_55 = arith.constant 0 : index
    %c0_56 = arith.constant 0 : index
    %52 = vector.load %arg8[%c0_53, %c0_54, %c0_55, %c0_56] : memref<1x1x1x128xf32, #tpu.memory_space<vmem>>, vector<1x1x1x128xf32>
    %53 = vector.shape_cast %52 : vector<1x1x1x128xf32> to vector<1x128xf32>
    %54 = vector.shape_cast %51 : vector<1x128xf32> to vector<1x1x1x128xf32>
    tpu.vector_store %arg8[%c0_53, %c0_54, %c0_55, %c0_56], %54 {strides = array<i32>} : memref<1x1x1x128xf32, #tpu.memory_space<vmem>>, vector<1x1x1x128xf32>,
    return
  }
  func.func @transform_0(%arg0: i32, %arg1: i32) -> (i32, i32, i32, i32) {
    %c0_i32 = arith.constant 0 : i32
    %c0_i32_0 = arith.constant 0 : i32
    %c0_i32_1 = arith.constant 0 : i32
    return %arg0, %arg1, %c0_i32, %c0_i32_0 : i32, i32, i32, i32
  }
  func.func @transform_1(%arg0: i32, %arg1: i32) -> (i32, i32, i32) {
    %c0_i32 = arith.constant 0 : i32
    %c0_i32_0 = arith.constant 0 : i32
    %c0_i32_1 = arith.constant 0 : i32
    %c0_i32_2 = arith.constant 0 : i32
    return %c0_i32, %c0_i32_0, %c0_i32_1 : i32, i32, i32
  }
  func.func @transform_2(%arg0: i32, %arg1: i32) -> (i32, i32, i32) {
    %c0_i32 = arith.constant 0 : i32
    %c0_i32_0 = arith.constant 0 : i32
    %c0_i32_1 = arith.constant 0 : i32
    %c0_i32_2 = arith.constant 0 : i32
    return %c0_i32, %c0_i32_0, %c0_i32_1 : i32, i32, i32
  }
  func.func @transform_3(%arg0: i32, %arg1: i32) -> (i32, i32) {
    %c0_i32 = arith.constant 0 : i32
    %c0_i32_0 = arith.constant 0 : i32
    %c0_i32_1 = arith.constant 0 : i32
    return %c0_i32, %c0_i32_0 : i32, i32
  }
  func.func @transform_4(%arg0: i32, %arg1: i32) -> (i32, i32, i32) {
    %c0_i32 = arith.constant 0 : i32
    %c0_i32_0 = arith.constant 0 : i32
    return %arg0, %arg1, %c0_i32 : i32, i32, i32
  }
  func.func @transform_5(%arg0: i32, %arg1: i32) -> (i32, i32, i32, i32) {
    %c0_i32 = arith.constant 0 : i32
    %c0_i32_0 = arith.constant 0 : i32
    %c0_i32_1 = arith.constant 0 : i32
    return %arg0, %arg1, %c0_i32, %c0_i32_0 : i32, i32, i32, i32
  }
  func.func @transform_6(%arg0: i32, %arg1: i32) -> (i32, i32, i32, i32) {
    %c0_i32 = arith.constant 0 : i32
    %c0_i32_0 = arith.constant 0 : i32
    %c0_i32_1 = arith.constant 0 : i32
    return %arg0, %arg1, %c0_i32, %c0_i32_0 : i32, i32, i32, i32
  }
}

</mosaic_0001>

<llo_original>
// kernel: relu_conv_bn_relu_conv.3
$region0: #{relu_conv_bn_relu_conv.3}
  #allocation0 [shape = 'u32[]', space=smem, size = 0x4, offset = 0x4, fixed_abs, tag = 'smem constant byte address 0x4 - core index']
  #allocation1 [shape = 'u32[144,128]{1,0:T(1,128)}', space=vmem, size = 0x12000, scoped, tag = 'internal scratch']
  %s0 = inlined_call_operand.vmem [shape: bf16[2,80,128], index: 0, kind: input, shape index: {}]
  %s1 = inlined_call_operand.vmem [shape: f32[1,128], index: 1, kind: input, shape index: {}]
  %s2 = inlined_call_operand.vmem [shape: f32[1,128], index: 2, kind: input, shape index: {}]
  %s3 = inlined_call_operand.vmem [shape: bf16[128,512], index: 3, kind: input, shape index: {}]
  %s4 = inlined_call_operand.vmem [shape: f32[2,80,512], index: 4, kind: output, shape index: {}]
  %s5 = sld [smem:[#allocation0]]
  $region49: #{relu_conv_bn_relu_conv.3} parent=0
    _
  %s7 = ssub.s32 1, %s5
  %s8 = scalar_select 0, %s7, %s5
  loop: start=0, step=1, limit=6
  $region2: #{relu_conv_bn_relu_conv.3} parent=0 // loop_pre_header
    _
  $region3: #{relu_conv_bn_relu_conv.3} parent=0 // loop_header
    %s10 = sphi 0, %s14
    %p11 = scmp.ge.s32.totalorder %s10, 6
    %s17 = sphi 0, %s29
    %s18 = sphi 0, %s25
    %s19 = sphi 0, %s17
    %s20 = sphi 0, %s18
    %s21 = sphi 0, %s19
    %s22 = sphi 0, %s20
    %s34 = sphi 0, %s36
    %s37 = sphi 0, %s34
    %s38 = sphi 0, %s37
    %s54 = sphi 0, %s38
    %s58 = sphi 0, %s58
    %s60 = sphi 0, %s58
    %s61 = sphi 0, %s60
    %s75 = sphi 0, %s61
    %s79 = sphi 0, %s79
    %s81 = sphi 0, %s79
    %s82 = sphi 0, %s81
    %s96 = sphi 0, %s82
    %s100 = sphi 0, %s100
    %s102 = sphi 0, %s100
    %s103 = sphi 0, %s102
    %s117 = sphi 0, %s103
    %s125 = sphi 0, %s127
    %s128 = sphi 0, %s125
    %s129 = sphi 0, %s128
    %s145 = sphi 0, %s129
  $region4: #{relu_conv_bn_relu_conv.3} parent=0 // loop_header_branch
    %13 = sbr.rel (%p11) target = $region8
  $region5: #{relu_conv_bn_relu_conv.3} parent=0 // loop_body
    %s15 = ssub.s32 %s10, 1
    %s16 = ssub.s32 %s10, 2
    %s23 = sadd.s32 1, %s18
    %p24 = scmp.ge.s32.totalorder %s23, 2
    %s25 = scalar_select %p24, 0, %s23
    %s26 = sadd.s32 1, %s17
    %s27 = scalar_select %p24, %s26, %s17
    %p28 = scmp.ge.s32.totalorder %s27, 2
    %s29 = scalar_select %p28, 0, %s27
    %s30 = ssub.s32 %s17, %s29
    %s31 = ssub.s32 %s18, %s25
    %s32 = sor.u32 %s30, %s31
    %p33 = scmp.eq.s32.totalorder %s32, 0
    %s35 = sadd.s32 %s34, 1
    %s36 = scalar_select %p33, %s34, %s35
    %p39 = pneg %p33
    %p40 = scmp.eq.s32.totalorder %s10, 3
    %p41 = por %p39, %p40
    %p42 = scmp.ne.s32.totalorder %s34, %s37
    %p43 = scmp.eq.s32.totalorder %s10, 0
    %p44 = por %p42, %p43
    %p45 = scmp.ne.s32.totalorder %s34, %s37
    %p46 = scmp.eq.s32.totalorder %s15, 3
    %p47 = por %p45, %p46
    %p48 = scmp.ne.s32.totalorder %s37, %s38
    %p49 = scmp.eq.s32.totalorder %s15, 0
    %p50 = por %p48, %p49
    %p51 = scmp.ne.s32.totalorder %s37, %s38
    %p52 = scmp.eq.s32.totalorder %s16, 3
    %p53 = por %p51, %p52
    %p55 = scmp.ne.s32.totalorder %s38, %s54
    %p56 = scmp.eq.s32.totalorder %s16, 0
    %p57 = por %p55, %p56
    %s59 = sadd.s32 %s58, 1
    %p62 = scmp.eq.s32.totalorder %s10, 3
    %p63 = scmp.ne.s32.totalorder %s58, %s60
    %p64 = scmp.eq.s32.totalorder %s10, 0
    %p65 = por %p63, %p64
    %p66 = scmp.ne.s32.totalorder %s58, %s60
    %p67 = scmp.eq.s32.totalorder %s15, 3
    %p68 = por %p66, %p67
    %p69 = scmp.ne.s32.totalorder %s60, %s61
    %p70 = scmp.eq.s32.totalorder %s15, 0
    %p71 = por %p69, %p70
    %p72 = scmp.ne.s32.totalorder %s60, %s61
    %p73 = scmp.eq.s32.totalorder %s16, 3
    %p74 = por %p72, %p73
    %p76 = scmp.ne.s32.totalorder %s61, %s75
    %p77 = scmp.eq.s32.totalorder %s16, 0
    %p78 = por %p76, %p77
    %s80 = sadd.s32 %s79, 1
    %p83 = scmp.eq.s32.totalorder %s10, 3
    %p84 = scmp.ne.s32.totalorder %s79, %s81
    %p85 = scmp.eq.s32.totalorder %s10, 0
    %p86 = por %p84, %p85
    %p87 = scmp.ne.s32.totalorder %s79, %s81
    %p88 = scmp.eq.s32.totalorder %s15, 3
    %p89 = por %p87, %p88
    %p90 = scmp.ne.s32.totalorder %s81, %s82
    %p91 = scmp.eq.s32.totalorder %s15, 0
    %p92 = por %p90, %p91
    %p93 = scmp.ne.s32.totalorder %s81, %s82
    %p94 = scmp.eq.s32.totalorder %s16, 3
    %p95 = por %p93, %p94
    %p97 = scmp.ne.s32.totalorder %s82, %s96
    %p98 = scmp.eq.s32.totalorder %s16, 0
    %p99 = por %p97, %p98
    %s101 = sadd.s32 %s100, 1
    %p104 = scmp.eq.s32.totalorder %s10, 3
    %p105 = scmp.ne.s32.totalorder %s100, %s102
    %p106 = scmp.eq.s32.totalorder %s10, 0
    %p107 = por %p105, %p106
    %p108 = scmp.ne.s32.totalorder %s100, %s102
    %p109 = scmp.eq.s32.totalorder %s15, 3
    %p110 = por %p108, %p109
    %p111 = scmp.ne.s32.totalorder %s102, %s103
    %p112 = scmp.eq.s32.totalorder %s15, 0
    %p113 = por %p111, %p112
    %p114 = scmp.ne.s32.totalorder %s102, %s103
    %p115 = scmp.eq.s32.totalorder %s16, 3
    %p116 = por %p114, %p115
    %p118 = scmp.ne.s32.totalorder %s103, %s117
    %p119 = scmp.eq.s32.totalorder %s16, 0
    %p120 = por %p118, %p119
    %s121 = ssub.s32 %s17, %s29
    %s122 = ssub.s32 %s18, %s25
    %s123 = sor.u32 %s121, %s122
    %p124 = scmp.eq.s32.totalorder %s123, 0
    %s126 = sadd.s32 %s125, 1
    %s127 = scalar_select %p124, %s125, %s126
    %p130 = pneg %p124
    %p131 = scmp.eq.s32.totalorder %s10, 3
    %p132 = por %p130, %p131
    %p133 = scmp.ne.s32.totalorder %s125, %s128
    %p134 = scmp.eq.s32.totalorder %s10, 0
    %p135 = por %p133, %p134
    %p136 = scmp.ne.s32.totalorder %s125, %s128
    %p137 = scmp.eq.s32.totalorder %s15, 3
    %p138 = por %p136, %p137
    %p139 = scmp.ne.s32.totalorder %s128, %s129
    %p140 = scmp.eq.s32.totalorder %s15, 0
    %p141 = por %p139, %p140
    %p142 = scmp.ne.s32.totalorder %s128, %s129
    %p143 = scmp.eq.s32.totalorder %s16, 3
    %p144 = por %p142, %p143
    %p146 = scmp.ne.s32.totalorder %s129, %s145
    %p147 = scmp.eq.s32.totalorder %s16, 0
    %p148 = por %p146, %p147
    %p149 = scmp.le.s32.totalorder 1, %s10
    %p150 = scmp.lt.s32.totalorder %s10, 5
    %p151 = pnand %p149, %p150
    %p152 = pneg %p151
    // Predicated region
    $region9: #{relu_conv_bn_relu_conv.3} parent=5 // pred_check
      _
    $region10: #{relu_conv_bn_relu_conv.3} parent=5 // pred_check_branch
      %154 = sbr.rel (%p151) target = $region12
    $region11: #{relu_conv_bn_relu_conv.3} parent=5 // pred_region
      %s155 = ssub.s32 %s10, 1
      // Predicated region
      $region13: #{relu_conv_bn_relu_conv.3} parent=11 // pred_check
        %p156 = pneg %p71
      $region14: #{relu_conv_bn_relu_conv.3} parent=11 // pred_check_branch
        %158 = sbr.rel (%p156) target = $region16
      $region15: #{relu_conv_bn_relu_conv.3} parent=11 // pred_region
        _
      $region16: #{relu_conv_bn_relu_conv.3} parent=11 // pred_fallthru
        _
      // Predicated region
      $region17: #{relu_conv_bn_relu_conv.3} parent=11 // pred_check
        %p159 = pneg %p92
      $region18: #{relu_conv_bn_relu_conv.3} parent=11 // pred_check_branch
        %161 = sbr.rel (%p159) target = $region20
      $region19: #{relu_conv_bn_relu_conv.3} parent=11 // pred_region
        _
      $region20: #{relu_conv_bn_relu_conv.3} parent=11 // pred_fallthru
        _
      // Predicated region
      $region21: #{relu_conv_bn_relu_conv.3} parent=11 // pred_check
        %p162 = pneg %p113
      $region22: #{relu_conv_bn_relu_conv.3} parent=11 // pred_check_branch
        %164 = sbr.rel (%p162) target = $region24
      $region23: #{relu_conv_bn_relu_conv.3} parent=11 // pred_region
        _
      $region24: #{relu_conv_bn_relu_conv.3} parent=11 // pred_fallthru
        _
    $region12: #{relu_conv_bn_relu_conv.3} parent=5 // pred_fallthru
      _
    %p165 = scmp.lt.s32.totalorder %s10, 4
    // Predicated region
    $region25: #{relu_conv_bn_relu_conv.3} parent=5 // pred_check
      %p166 = pneg %p165
    $region26: #{relu_conv_bn_relu_conv.3} parent=5 // pred_check_branch
      %168 = sbr.rel (%p166) target = $region28
    $region27: #{relu_conv_bn_relu_conv.3} parent=5 // pred_region
      // Predicated region
      $region29: #{relu_conv_bn_relu_conv.3} parent=27 // pred_check
        %p169 = pneg %p44
      $region30: #{relu_conv_bn_relu_conv.3} parent=27 // pred_check_branch
        %171 = sbr.rel (%p169) target = $region32
      $region31: #{relu_conv_bn_relu_conv.3} parent=27 // pred_region
        %s172 = smul.u32 5, %s18
        %p173 = scmp.lt.s32.totalorder %s17, 1
        %s174 = scalar_select %p173, %s17, 1
        %p175 = scmp.lt.s32.totalorder %s172, 9
        %s176 = scalar_select %p175, %s172, 9
        %s177 = smul.addr %s174, 10
        %s178 = sadd.s32 %s176, %s177
        %s179 = smul.addr %s178, 4
        %s180 = scalar_lea.vmem %s0, %s179
        %s181 = smul.u32 5, %s18
      $region32: #{relu_conv_bn_relu_conv.3} parent=27 // pred_fallthru
        _
    $region28: #{relu_conv_bn_relu_conv.3} parent=5 // pred_fallthru
      _
    %p182 = scmp.le.s32.totalorder 1, %s10
    %p183 = scmp.lt.s32.totalorder %s10, 5
    %p184 = pnand %p182, %p183
    %p185 = pneg %p184
    // Predicated region
    $region33: #{relu_conv_bn_relu_conv.3} parent=5 // pred_check
      _
    $region34: #{relu_conv_bn_relu_conv.3} parent=5 // pred_check_branch
      %187 = sbr.rel (%p184) target = $region36
    $region35: #{relu_conv_bn_relu_conv.3} parent=5 // pred_region
      %s188 = ssub.s32 %s10, 1
      %s189 = smul.u32 5, %s20
      %p190 = scmp.lt.s32.totalorder %s19, 1
      %s191 = scalar_select %p190, %s19, 1
      %p192 = scmp.lt.s32.totalorder %s189, 9
      %s193 = scalar_select %p192, %s189, 9
      %s194 = smul.addr %s191, 10
      %s195 = sadd.s32 %s193, %s194
      %s196 = smul.addr %s195, 4
      %s197 = scalar_lea.vmem %s0, %s196
      %p198 = pneg %p50
      %p199 = pneg %p47
      %p200 = pneg %p71
      %p201 = pneg %p68
      %p202 = pneg %p92
      %p203 = pneg %p89
      %p204 = pneg %p113
      %p205 = pneg %p110
      %p206 = pneg %p141
      %p207 = pneg %p138
      %s208 = smul.u32 5, %s20
      %p209 = scmp.lt.s32.totalorder %s19, 1
      %s210 = scalar_select %p209, %s19, 1
      %p211 = scmp.lt.s32.totalorder %s208, 9
      %s212 = scalar_select %p211, %s208, 9
      %s213 = smul.addr %s212, 4
      %s214 = smul.addr %s210, 40
      %s215 = sadd.s32 %s213, %s214
      %s216 = smul.addr %s215, 8
      %s217 = scalar_lea.vmem %s4, %s216
      %s218 = smul.u32 5, %s20
      %p219 = scmp.lt.s32.totalorder %s19, 1
      %s220 = scalar_select %p219, %s19, 1
      %p221 = scmp.lt.s32.totalorder %s218, 9
      %s222 = scalar_select %p221, %s218, 9
      %s223 = smul.addr %s220, 10
      %s224 = sadd.s32 %s222, %s223
      %s225 = smul.addr %s224, 4
      %s226 = scalar_lea.vmem %s0, %s225
      %s227 = smul.u32 5, %s20
      %s228 = smul.u32 5, %s20
      %p229 = scmp.lt.s32.totalorder %s19, 1
      %s230 = scalar_select %p229, %s19, 1
      %p231 = scmp.lt.s32.totalorder %s228, 9
      %s232 = scalar_select %p231, %s228, 9
      %s233 = smul.addr %s232, 4
      %s234 = smul.addr %s230, 40
      %s235 = sadd.s32 %s233, %s234
      %s236 = smul.addr %s235, 8
      %s237 = scalar_lea.vmem %s4, %s236
      %s238 = smul.u32 5, %s20
      %v240 = vld [vmem:[%s226] sm:$0xf]
      %v241 = vld [vmem:[%s226 + $0x4] sm:$0xf]
      %v242 = vld [vmem:[%s226 + $0x8] sm:$0xf]
      %v243 = vld [vmem:[%s226 + $0xc] sm:$0xf]
      %v244 = vld [vmem:[%s226 + $0x10] sm:$0xf]
      %v245 = vunpack.c.l.bf16 %v240
      %v246 = vunpack.c.l.bf16 %v241
      %v247 = vunpack.c.l.bf16 %v242
      %v248 = vunpack.c.l.bf16 %v243
      %v249 = vunpack.c.l.bf16 %v244
      %v250 = vld [vmem:[%s1] sm:$0x1]
      %v252 = vlaneseq
      %v253 = vshrl.u32 %v252, 7
      %v254 = vsub.s32 0, %v253
      %v255 = vrot.slane %v250, %v254
      %v257 = vmul.f32 %v245, %v255
      %v258 = vmul.f32 %v246, %v255
      %v259 = vmul.f32 %v247, %v255
      %v260 = vmul.f32 %v248, %v255
      %v261 = vmul.f32 %v249, %v255
      %v262 = vld [vmem:[%s2] sm:$0x1]
      %v264 = vlaneseq
      %v265 = vshrl.u32 %v264, 7
      %v266 = vsub.s32 0, %v265
      %v267 = vrot.slane %v262, %v266
      %v269 = vadd.f32 %v257, %v267
      %v270 = vadd.f32 %v258, %v267
      %v271 = vadd.f32 %v259, %v267
      %v272 = vadd.f32 %v260, %v267
      %v273 = vadd.f32 %v261, %v267
      %v274 = vmax.f32 %v269, 0.0
      %v275 = vmax.f32 %v270, 0.0
      %v276 = vmax.f32 %v271, 0.0
      %v277 = vmax.f32 %v272, 0.0
      %v278 = vmax.f32 %v273, 0.0
      %v279 = vpack.c.bf16 %v275, %v274
      %v280 = vpack.c.bf16 %v277, %v276
      %v281 = vpack.c.bf16 %v278, %v278
      %v282 = vld [vmem:[%s3] sm:$0xff]
      %v283 = vld [vmem:[%s3 + $0x8] sm:$0xff]
      %v284 = vld [vmem:[%s3 + $0x10] sm:$0xff]
      %v285 = vld [vmem:[%s3 + $0x18] sm:$0xff]
      %v286 = vld [vmem:[%s3 + $0x20] sm:$0xff]
      %v287 = vld [vmem:[%s3 + $0x28] sm:$0xff]
      %v288 = vld [vmem:[%s3 + $0x30] sm:$0xff]
      %v289 = vld [vmem:[%s3 + $0x38] sm:$0xff]
      %v290 = vld [vmem:[%s3 + $0x40] sm:$0xff]
      %v291 = vld [vmem:[%s3 + $0x48] sm:$0xff]
      %v292 = vld [vmem:[%s3 + $0x50] sm:$0xff]
      %v293 = vld [vmem:[%s3 + $0x58] sm:$0xff]
      %v294 = vld [vmem:[%s3 + $0x60] sm:$0xff]
      %v295 = vld [vmem:[%s3 + $0x68] sm:$0xff]
      %v296 = vld [vmem:[%s3 + $0x70] sm:$0xff]
      %v297 = vld [vmem:[%s3 + $0x78] sm:$0xff]
      %v298 = vld [vmem:[%s3 + $0x80] sm:$0xff]
      %v299 = vld [vmem:[%s3 + $0x88] sm:$0xff]
      %v300 = vld [vmem:[%s3 + $0x90] sm:$0xff]
      %v301 = vld [vmem:[%s3 + $0x98] sm:$0xff]
      %v302 = vld [vmem:[%s3 + $0xa0] sm:$0xff]
      %v303 = vld [vmem:[%s3 + $0xa8] sm:$0xff]
      %v304 = vld [vmem:[%s3 + $0xb0] sm:$0xff]
      %v305 = vld [vmem:[%s3 + $0xb8] sm:$0xff]
      %v306 = vld [vmem:[%s3 + $0xc0] sm:$0xff]
      %v307 = vld [vmem:[%s3 + $0xc8] sm:$0xff]
      %v308 = vld [vmem:[%s3 + $0xd0] sm:$0xff]
      %v309 = vld [vmem:[%s3 + $0xd8] sm:$0xff]
      %v310 = vld [vmem:[%s3 + $0xe0] sm:$0xff]
      %v311 = vld [vmem:[%s3 + $0xe8] sm:$0xff]
      %v312 = vld [vmem:[%s3 + $0xf0] sm:$0xff]
      %v313 = vld [vmem:[%s3 + $0xf8] sm:$0xff]
      %v346 = vunpack.c.l.b16 %v282
      %v347 = vunpack.c.h.b16 %v282
      %v348 = vunpack.c.l.b16 %v283
      %v349 = vunpack.c.h.b16 %v283
      %v350 = vunpack.c.l.b16 %v284
      %v351 = vunpack.c.h.b16 %v284
      %v352 = vunpack.c.l.b16 %v285
      %v353 = vunpack.c.h.b16 %v285
      %v354 = vunpack.c.l.b16 %v286
      %v355 = vunpack.c.h.b16 %v286
      %v356 = vunpack.c.l.b16 %v287
      %v357 = vunpack.c.h.b16 %v287
      %v358 = vunpack.c.l.b16 %v288
      %v359 = vunpack.c.h.b16 %v288
      %v360 = vunpack.c.l.b16 %v289
      %v361 = vunpack.c.h.b16 %v289
      %v362 = vunpack.c.l.b16 %v290
      %v363 = vunpack.c.h.b16 %v290
      %v364 = vunpack.c.l.b16 %v291
      %v365 = vunpack.c.h.b16 %v291
      %v366 = vunpack.c.l.b16 %v292
      %v367 = vunpack.c.h.b16 %v292
      %v368 = vunpack.c.l.b16 %v293
      %v369 = vunpack.c.h.b16 %v293
      %v370 = vunpack.c.l.b16 %v294
      %v371 = vunpack.c.h.b16 %v294
      %v372 = vunpack.c.l.b16 %v295
      %v373 = vunpack.c.h.b16 %v295
      %v374 = vunpack.c.l.b16 %v296
      %v375 = vunpack.c.h.b16 %v296
      %v376 = vunpack.c.l.b16 %v297
      %v377 = vunpack.c.h.b16 %v297
      %v378 = vunpack.c.l.b16 %v298
      %v379 = vunpack.c.h.b16 %v298
      %v380 = vunpack.c.l.b16 %v299
      %v381 = vunpack.c.h.b16 %v299
      %v382 = vunpack.c.l.b16 %v300
      %v383 = vunpack.c.h.b16 %v300
      %v384 = vunpack.c.l.b16 %v301
      %v385 = vunpack.c.h.b16 %v301
      %v386 = vunpack.c.l.b16 %v302
      %v387 = vunpack.c.h.b16 %v302
      %v388 = vunpack.c.l.b16 %v303
      %v389 = vunpack.c.h.b16 %v303
      %v390 = vunpack.c.l.b16 %v304
      %v391 = vunpack.c.h.b16 %v304
      %v392 = vunpack.c.l.b16 %v305
      %v393 = vunpack.c.h.b16 %v305
      %v394 = vunpack.c.l.b16 %v306
      %v395 = vunpack.c.h.b16 %v306
      %v396 = vunpack.c.l.b16 %v307
      %v397 = vunpack.c.h.b16 %v307
      %v398 = vunpack.c.l.b16 %v308
      %v399 = vunpack.c.h.b16 %v308
      %v400 = vunpack.c.l.b16 %v309
      %v401 = vunpack.c.h.b16 %v309
      %v402 = vunpack.c.l.b16 %v310
      %v403 = vunpack.c.h.b16 %v310
      %v404 = vunpack.c.l.b16 %v311
      %v405 = vunpack.c.h.b16 %v311
      %v406 = vunpack.c.l.b16 %v312
      %v407 = vunpack.c.h.b16 %v312
      %v408 = vunpack.c.l.b16 %v313
      %v409 = vunpack.c.h.b16 %v313
      %v410 = vpack.c.b16 %v350, %v346
      %v411 = vpack.c.b16 %v351, %v347
      %v412 = vpack.c.b16 %v352, %v348
      %v413 = vpack.c.b16 %v353, %v349
      %v414 = vpack.c.b16 %v358, %v354
      %v415 = vpack.c.b16 %v359, %v355
      %v416 = vpack.c.b16 %v360, %v356
      %v417 = vpack.c.b16 %v361, %v357
      %v418 = vpack.c.b16 %v366, %v362
      %v419 = vpack.c.b16 %v367, %v363
      %v420 = vpack.c.b16 %v368, %v364
      %v421 = vpack.c.b16 %v369, %v365
      %v422 = vpack.c.b16 %v374, %v370
      %v423 = vpack.c.b16 %v375, %v371
      %v424 = vpack.c.b16 %v376, %v372
      %v425 = vpack.c.b16 %v377, %v373
      %v426 = vpack.c.b16 %v382, %v378
      %v427 = vpack.c.b16 %v383, %v379
      %v428 = vpack.c.b16 %v384, %v380
      %v429 = vpack.c.b16 %v385, %v381
      %v430 = vpack.c.b16 %v390, %v386
      %v431 = vpack.c.b16 %v391, %v387
      %v432 = vpack.c.b16 %v392, %v388
      %v433 = vpack.c.b16 %v393, %v389
      %v434 = vpack.c.b16 %v398, %v394
      %v435 = vpack.c.b16 %v399, %v395
      %v436 = vpack.c.b16 %v400, %v396
      %v437 = vpack.c.b16 %v401, %v397
      %v438 = vpack.c.b16 %v406, %v402
      %v439 = vpack.c.b16 %v407, %v403
      %v440 = vpack.c.b16 %v408, %v404
      %v441 = vpack.c.b16 %v409, %v405
      %474 = vmatprep.subr.bf16.mxu0 %v439
      %475 = vmatpush1.bf16.msra.mxu0 %v438
      %476 = vmatprep.subr.bf16.mxu0 %v435
      %477 = vmatpush1.bf16.msra.mxu0 %v434
      %478 = vmatprep.subr.bf16.mxu0 %v431
      %479 = vmatpush1.bf16.msra.mxu0 %v430
      %480 = vmatprep.subr.bf16.mxu0 %v427
      %481 = vmatpush1.bf16.msra.mxu0 %v426
      %482 = vmatprep.subr.bf16.mxu0 %v423
      %483 = vmatpush1.bf16.msra.mxu0 %v422
      %484 = vmatprep.subr.bf16.mxu0 %v419
      %485 = vmatpush1.bf16.msra.mxu0 %v418
      %486 = vmatprep.subr.bf16.mxu0 %v415
      %487 = vmatpush1.bf16.msra.mxu0 %v414
      %488 = vmatprep.subr.bf16.mxu0 %v411
      %489 = vmatpush1.bf16.msra.mxu0 %v410
      %490 = vmatprep.subr.bf16.mxu0 0
      %491 = vmatpush2.bf16.msra.mxu0 0
      %492 = vmatprep.subr.bf16.mxu0 0
      %493 = vmatpush2.bf16.msra.mxu0 0
      %494 = vmatprep.subr.bf16.mxu0 0
      %495 = vmatpush2.bf16.msra.mxu0 0
      %496 = vmatprep.subr.bf16.mxu0 0
      %497 = vmatpush2.bf16.msra.mxu0 0
      %498 = vmatprep.subr.bf16.mxu0 0
      %499 = vmatpush2.bf16.msra.mxu0 0
      %500 = vmatprep.subr.bf16.mxu0 0
      %501 = vmatpush2.bf16.msra.mxu0 0
      %502 = vmatprep.subr.bf16.mxu0 0
      %503 = vmatpush2.bf16.msra.mxu0 0
      %504 = vmatprep.subr.bf16.mxu0 0
      %505 = vmatpush2.bf16.msra.mxu0 0
      %506 = vmatprep.mubr.bf16.mxu0 0
      %507 = vmatmul.mubr.bf16.gmra.mxu0 %v279
      %v508 = vpop.f32.mrf.mxu0
      %v509 = vadd.f32 0.0, %v508
      %v510 = vpop.f32.mrf.mxu0
      %v511 = vadd.f32 0.0, %v510
      %v512 = vpop.f32.mrf.mxu0
      %v513 = vadd.f32 0.0, %v512
      %v514 = vpop.f32.mrf.mxu0
      %v515 = vadd.f32 0.0, %v514
      %516 = vmatprep.mubr.bf16.mxu0 0
      %517 = vmatmul.mubr.bf16.gmra.mxu0 %v280
      %v518 = vpop.f32.mrf.mxu0
      %v519 = vadd.f32 0.0, %v518
      %v520 = vpop.f32.mrf.mxu0
      %v521 = vadd.f32 0.0, %v520
      %v522 = vpop.f32.mrf.mxu0
      %v523 = vadd.f32 0.0, %v522
      %v524 = vpop.f32.mrf.mxu0
      %v525 = vadd.f32 0.0, %v524
      %526 = vmatprep.mubr.bf16.mxu0 0
      %527 = vmatmul.mubr.bf16.gmra.mxu0 %v281
      %v528 = vpop.f32.mrf.mxu0
      %v529 = vadd.f32 0.0, %v528
      %v530 = vpop.f32.mrf.mxu0
      %v531 = vadd.f32 0.0, %v530
      %v532 = vpop.f32.mrf.mxu0
      %v533 = vpop.f32.mrf.mxu0
      %534 = vdwg.mxu0
      %535 = vmatprep.subr.bf16.mxu0 %v441
      %536 = vmatpush1.bf16.msra.mxu0 %v440
      %537 = vmatprep.subr.bf16.mxu0 %v437
      %538 = vmatpush1.bf16.msra.mxu0 %v436
      %539 = vmatprep.subr.bf16.mxu0 %v433
      %540 = vmatpush1.bf16.msra.mxu0 %v432
      %541 = vmatprep.subr.bf16.mxu0 %v429
      %542 = vmatpush1.bf16.msra.mxu0 %v428
      %543 = vmatprep.subr.bf16.mxu0 %v425
      %544 = vmatpush1.bf16.msra.mxu0 %v424
      %545 = vmatprep.subr.bf16.mxu0 %v421
      %546 = vmatpush1.bf16.msra.mxu0 %v420
      %547 = vmatprep.subr.bf16.mxu0 %v417
      %548 = vmatpush1.bf16.msra.mxu0 %v416
      %549 = vmatprep.subr.bf16.mxu0 %v413
      %550 = vmatpush1.bf16.msra.mxu0 %v412
      %551 = vmatprep.subr.bf16.mxu0 0
      %552 = vmatpush2.bf16.msra.mxu0 0
      %553 = vmatprep.subr.bf16.mxu0 0
      %554 = vmatpush2.bf16.msra.mxu0 0
      %555 = vmatprep.subr.bf16.mxu0 0
      %556 = vmatpush2.bf16.msra.mxu0 0
      %557 = vmatprep.subr.bf16.mxu0 0
      %558 = vmatpush2.bf16.msra.mxu0 0
      %559 = vmatprep.subr.bf16.mxu0 0
      %560 = vmatpush2.bf16.msra.mxu0 0
      %561 = vmatprep.subr.bf16.mxu0 0
      %562 = vmatpush2.bf16.msra.mxu0 0
      %563 = vmatprep.subr.bf16.mxu0 0
      %564 = vmatpush2.bf16.msra.mxu0 0
      %565 = vmatprep.subr.bf16.mxu0 0
      %566 = vmatpush2.bf16.msra.mxu0 0
      %567 = vmatprep.mubr.bf16.mxu0 0
      %568 = vmatmul.mubr.bf16.gmra.mxu0 %v279
      %v569 = vpop.f32.mrf.mxu0
      %v570 = vadd.f32 0.0, %v569
      %v571 = vpop.f32.mrf.mxu0
      %v572 = vadd.f32 0.0, %v571
      %v573 = vpop.f32.mrf.mxu0
      %v574 = vadd.f32 0.0, %v573
      %v575 = vpop.f32.mrf.mxu0
      %v576 = vadd.f32 0.0, %v575
      %577 = vmatprep.mubr.bf16.mxu0 0
      %578 = vmatmul.mubr.bf16.gmra.mxu0 %v280
      %v579 = vpop.f32.mrf.mxu0
      %v580 = vadd.f32 0.0, %v579
      %v581 = vpop.f32.mrf.mxu0
      %v582 = vadd.f32 0.0, %v581
      %v583 = vpop.f32.mrf.mxu0
      %v584 = vadd.f32 0.0, %v583
      %v585 = vpop.f32.mrf.mxu0
      %v586 = vadd.f32 0.0, %v585
      %587 = vmatprep.mubr.bf16.mxu0 0
      %588 = vmatmul.mubr.bf16.gmra.mxu0 %v281
      %v589 = vpop.f32.mrf.mxu0
      %v590 = vadd.f32 0.0, %v589
      %v591 = vpop.f32.mrf.mxu0
      %v592 = vadd.f32 0.0, %v591
      %v593 = vpop.f32.mrf.mxu0
      %v594 = vpop.f32.mrf.mxu0
      %595 = vdwg.mxu0
      %596 = vst [vmem:[%s237] sm:$0xff] %v509
      %597 = vst [vmem:[%s237 + $0x8] sm:$0xff] %v511
      %598 = vst [vmem:[%s237 + $0x10] sm:$0xff] %v570
      %599 = vst [vmem:[%s237 + $0x18] sm:$0xff] %v572
      %600 = vst [vmem:[%s237 + $0x20] sm:$0xff] %v513
      %601 = vst [vmem:[%s237 + $0x28] sm:$0xff] %v515
      %602 = vst [vmem:[%s237 + $0x30] sm:$0xff] %v574
      %603 = vst [vmem:[%s237 + $0x38] sm:$0xff] %v576
      %604 = vst [vmem:[%s237 + $0x40] sm:$0xff] %v519
      %605 = vst [vmem:[%s237 + $0x48] sm:$0xff] %v521
      %606 = vst [vmem:[%s237 + $0x50] sm:$0xff] %v580
      %607 = vst [vmem:[%s237 + $0x58] sm:$0xff] %v582
      %608 = vst [vmem:[%s237 + $0x60] sm:$0xff] %v523
      %609 = vst [vmem:[%s237 + $0x68] sm:$0xff] %v525
      %610 = vst [vmem:[%s237 + $0x70] sm:$0xff] %v584
      %611 = vst [vmem:[%s237 + $0x78] sm:$0xff] %v586
      %612 = vst [vmem:[%s237 + $0x80] sm:$0xff] %v529
      %613 = vst [vmem:[%s237 + $0x88] sm:$0xff] %v531
      %614 = vst [vmem:[%s237 + $0x90] sm:$0xff] %v590
      %615 = vst [vmem:[%s237 + $0x98] sm:$0xff] %v592
      %s616 = smul.u32 5, %s20
      %p617 = scmp.lt.s32.totalorder %s19, 1
      %s618 = scalar_select %p617, %s19, 1
      %p619 = scmp.lt.s32.totalorder %s616, 9
      %s620 = scalar_select %p619, %s616, 9
      %s621 = smul.addr %s620, 4
      %s622 = smul.addr %s618, 40
      %s623 = sadd.s32 %s621, %s622
      %s624 = smul.addr %s623, 8
      %s625 = scalar_lea.vmem %s4, %s624
      // Predicated region
      $region37: #{relu_conv_bn_relu_conv.3} parent=35 // pred_check
        %p626 = pneg %p138
      $region38: #{relu_conv_bn_relu_conv.3} parent=35 // pred_check_branch
        %628 = sbr.rel (%p626) target = $region40
      $region39: #{relu_conv_bn_relu_conv.3} parent=35 // pred_region
        %s629 = smul.u32 5, %s20
      $region40: #{relu_conv_bn_relu_conv.3} parent=35 // pred_fallthru
        _
    $region36: #{relu_conv_bn_relu_conv.3} parent=5 // pred_fallthru
      _
    %p630 = scmp.le.s32.totalorder 2, %s10
    // Predicated region
    $region41: #{relu_conv_bn_relu_conv.3} parent=5 // pred_check
      %p631 = pneg %p630
    $region42: #{relu_conv_bn_relu_conv.3} parent=5 // pred_check_branch
      %633 = sbr.rel (%p631) target = $region44
    $region43: #{relu_conv_bn_relu_conv.3} parent=5 // pred_region
      %s634 = ssub.s32 %s10, 2
      // Predicated region
      $region45: #{relu_conv_bn_relu_conv.3} parent=43 // pred_check
        %p635 = pneg %p144
      $region46: #{relu_conv_bn_relu_conv.3} parent=43 // pred_check_branch
        %637 = sbr.rel (%p635) target = $region48
      $region47: #{relu_conv_bn_relu_conv.3} parent=43 // pred_region
        %s638 = smul.u32 5, %s22
        %p639 = scmp.lt.s32.totalorder %s21, 1
        %s640 = scalar_select %p639, %s21, 1
        %p641 = scmp.lt.s32.totalorder %s638, 9
        %s642 = scalar_select %p641, %s638, 9
        %s643 = smul.addr %s642, 4
        %s644 = smul.addr %s640, 40
        %s645 = sadd.s32 %s643, %s644
        %s646 = smul.addr %s645, 8
        %s647 = scalar_lea.vmem %s4, %s646
      $region48: #{relu_conv_bn_relu_conv.3} parent=43 // pred_fallthru
        _
    $region44: #{relu_conv_bn_relu_conv.3} parent=5 // pred_fallthru
      _
  $region6: #{relu_conv_bn_relu_conv.3} parent=0 // loop_footer
    %s14 = sadd.s32 1, %s10
  $region7: #{relu_conv_bn_relu_conv.3} parent=0 // loop_footer_branch
    %9 = sbr.rel target = $region3
  $region8: #{relu_conv_bn_relu_conv.3} parent=0 // loop_exit
    _

// kernel: relu_conv_bn_relu_conv.2
$region0: #{relu_conv_bn_relu_conv.2}
  #allocation0 [shape = 'u32[]', space=smem, size = 0x4, offset = 0x4, fixed_abs, tag = 'smem constant byte address 0x4 - core index']
  #allocation1 [shape = 'u32[144,128]{1,0:T(1,128)}', space=vmem, size = 0x12000, scoped, tag = 'internal scratch']
  %s0 = inlined_call_operand.vmem [shape: bf16[2,2,56,512], index: 0, kind: input, shape index: {}]
  %s1 = inlined_call_operand.vmem [shape: bf16[3,256,128], index: 1, kind: input, shape index: {}]
  %s2 = inlined_call_operand.vmem [shape: bf16[3,128,128], index: 2, kind: input, shape index: {}]
  %s3 = inlined_call_operand.vmem [shape: f32[40,1], index: 3, kind: input, shape index: {}]
  %s4 = inlined_call_operand.vmem [shape: bf16[2,80,128], index: 4, kind: output, shape index: {0}]
  %s5 = inlined_call_operand.vmem [shape: f32[2,2,1,128], index: 5, kind: output, shape index: {1}]
  %s6 = inlined_call_operand.vmem [shape: f32[2,2,1,128], index: 6, kind: output, shape index: {2}]
  %7 = xla_tuple %s4, %s5, %s6
  %s8 = sld [smem:[#allocation0]]
  $region65: #{relu_conv_bn_relu_conv.2} parent=0
    _
  %s10 = ssub.s32 1, %s8
  %s11 = scalar_select 0, %s10, %s8
  loop: start=0, step=1, limit=6
  $region2: #{relu_conv_bn_relu_conv.2} parent=0 // loop_pre_header
    _
  $region3: #{relu_conv_bn_relu_conv.2} parent=0 // loop_header
    %s13 = sphi 0, %s17
    %p14 = scmp.ge.s32.totalorder %s13, 6
    %s20 = sphi 0, %s32
    %s21 = sphi 0, %s28
    %s22 = sphi 0, %s20
    %s23 = sphi 0, %s21
    %s24 = sphi 0, %s22
    %s25 = sphi 0, %s23
    %s37 = sphi 0, %s39
    %s40 = sphi 0, %s37
    %s41 = sphi 0, %s40
    %s57 = sphi 0, %s41
    %s61 = sphi 0, %s61
    %s63 = sphi 0, %s61
    %s64 = sphi 0, %s63
    %s78 = sphi 0, %s64
    %s82 = sphi 0, %s82
    %s84 = sphi 0, %s82
    %s85 = sphi 0, %s84
    %s99 = sphi 0, %s85
    %s103 = sphi 0, %s103
    %s105 = sphi 0, %s103
    %s106 = sphi 0, %s105
    %s120 = sphi 0, %s106
    %s128 = sphi 0, %s130
    %s131 = sphi 0, %s128
    %s132 = sphi 0, %s131
    %s148 = sphi 0, %s132
    %s156 = sphi 0, %s158
    %s159 = sphi 0, %s156
    %s160 = sphi 0, %s159
    %s176 = sphi 0, %s160
    %s184 = sphi 0, %s186
    %s187 = sphi 0, %s184
    %s188 = sphi 0, %s187
    %s204 = sphi 0, %s188
  $region4: #{relu_conv_bn_relu_conv.2} parent=0 // loop_header_branch
    %16 = sbr.rel (%p14) target = $region8
  $region5: #{relu_conv_bn_relu_conv.2} parent=0 // loop_body
    %s18 = ssub.s32 %s13, 1
    %s19 = ssub.s32 %s13, 2
    %s26 = sadd.s32 1, %s21
    %p27 = scmp.ge.s32.totalorder %s26, 2
    %s28 = scalar_select %p27, 0, %s26
    %s29 = sadd.s32 1, %s20
    %s30 = scalar_select %p27, %s29, %s20
    %p31 = scmp.ge.s32.totalorder %s30, 2
    %s32 = scalar_select %p31, 0, %s30
    %s33 = ssub.s32 %s20, %s32
    %s34 = ssub.s32 %s21, %s28
    %s35 = sor.u32 %s33, %s34
    %p36 = scmp.eq.s32.totalorder %s35, 0
    %s38 = sadd.s32 %s37, 1
    %s39 = scalar_select %p36, %s37, %s38
    %p42 = pneg %p36
    %p43 = scmp.eq.s32.totalorder %s13, 3
    %p44 = por %p42, %p43
    %p45 = scmp.ne.s32.totalorder %s37, %s40
    %p46 = scmp.eq.s32.totalorder %s13, 0
    %p47 = por %p45, %p46
    %p48 = scmp.ne.s32.totalorder %s37, %s40
    %p49 = scmp.eq.s32.totalorder %s18, 3
    %p50 = por %p48, %p49
    %p51 = scmp.ne.s32.totalorder %s40, %s41
    %p52 = scmp.eq.s32.totalorder %s18, 0
    %p53 = por %p51, %p52
    %p54 = scmp.ne.s32.totalorder %s40, %s41
    %p55 = scmp.eq.s32.totalorder %s19, 3
    %p56 = por %p54, %p55
    %p58 = scmp.ne.s32.totalorder %s41, %s57
    %p59 = scmp.eq.s32.totalorder %s19, 0
    %p60 = por %p58, %p59
    %s62 = sadd.s32 %s61, 1
    %p65 = scmp.eq.s32.totalorder %s13, 3
    %p66 = scmp.ne.s32.totalorder %s61, %s63
    %p67 = scmp.eq.s32.totalorder %s13, 0
    %p68 = por %p66, %p67
    %p69 = scmp.ne.s32.totalorder %s61, %s63
    %p70 = scmp.eq.s32.totalorder %s18, 3
    %p71 = por %p69, %p70
    %p72 = scmp.ne.s32.totalorder %s63, %s64
    %p73 = scmp.eq.s32.totalorder %s18, 0
    %p74 = por %p72, %p73
    %p75 = scmp.ne.s32.totalorder %s63, %s64
    %p76 = scmp.eq.s32.totalorder %s19, 3
    %p77 = por %p75, %p76
    %p79 = scmp.ne.s32.totalorder %s64, %s78
    %p80 = scmp.eq.s32.totalorder %s19, 0
    %p81 = por %p79, %p80
    %s83 = sadd.s32 %s82, 1
    %p86 = scmp.eq.s32.totalorder %s13, 3
    %p87 = scmp.ne.s32.totalorder %s82, %s84
    %p88 = scmp.eq.s32.totalorder %s13, 0
    %p89 = por %p87, %p88
    %p90 = scmp.ne.s32.totalorder %s82, %s84
    %p91 = scmp.eq.s32.totalorder %s18, 3
    %p92 = por %p90, %p91
    %p93 = scmp.ne.s32.totalorder %s84, %s85
    %p94 = scmp.eq.s32.totalorder %s18, 0
    %p95 = por %p93, %p94
    %p96 = scmp.ne.s32.totalorder %s84, %s85
    %p97 = scmp.eq.s32.totalorder %s19, 3
    %p98 = por %p96, %p97
    %p100 = scmp.ne.s32.totalorder %s85, %s99
    %p101 = scmp.eq.s32.totalorder %s19, 0
    %p102 = por %p100, %p101
    %s104 = sadd.s32 %s103, 1
    %p107 = scmp.eq.s32.totalorder %s13, 3
    %p108 = scmp.ne.s32.totalorder %s103, %s105
    %p109 = scmp.eq.s32.totalorder %s13, 0
    %p110 = por %p108, %p109
    %p111 = scmp.ne.s32.totalorder %s103, %s105
    %p112 = scmp.eq.s32.totalorder %s18, 3
    %p113 = por %p111, %p112
    %p114 = scmp.ne.s32.totalorder %s105, %s106
    %p115 = scmp.eq.s32.totalorder %s18, 0
    %p116 = por %p114, %p115
    %p117 = scmp.ne.s32.totalorder %s105, %s106
    %p118 = scmp.eq.s32.totalorder %s19, 3
    %p119 = por %p117, %p118
    %p121 = scmp.ne.s32.totalorder %s106, %s120
    %p122 = scmp.eq.s32.totalorder %s19, 0
    %p123 = por %p121, %p122
    %s124 = ssub.s32 %s20, %s32
    %s125 = ssub.s32 %s21, %s28
    %s126 = sor.u32 %s124, %s125
    %p127 = scmp.eq.s32.totalorder %s126, 0
    %s129 = sadd.s32 %s128, 1
    %s130 = scalar_select %p127, %s128, %s129
    %p133 = pneg %p127
    %p134 = scmp.eq.s32.totalorder %s13, 3
    %p135 = por %p133, %p134
    %p136 = scmp.ne.s32.totalorder %s128, %s131
    %p137 = scmp.eq.s32.totalorder %s13, 0
    %p138 = por %p136, %p137
    %p139 = scmp.ne.s32.totalorder %s128, %s131
    %p140 = scmp.eq.s32.totalorder %s18, 3
    %p141 = por %p139, %p140
    %p142 = scmp.ne.s32.totalorder %s131, %s132
    %p143 = scmp.eq.s32.totalorder %s18, 0
    %p144 = por %p142, %p143
    %p145 = scmp.ne.s32.totalorder %s131, %s132
    %p146 = scmp.eq.s32.totalorder %s19, 3
    %p147 = por %p145, %p146
    %p149 = scmp.ne.s32.totalorder %s132, %s148
    %p150 = scmp.eq.s32.totalorder %s19, 0
    %p151 = por %p149, %p150
    %s152 = ssub.s32 %s20, %s32
    %s153 = ssub.s32 %s21, %s28
    %s154 = sor.u32 %s152, %s153
    %p155 = scmp.eq.s32.totalorder %s154, 0
    %s157 = sadd.s32 %s156, 1
    %s158 = scalar_select %p155, %s156, %s157
    %p161 = pneg %p155
    %p162 = scmp.eq.s32.totalorder %s13, 3
    %p163 = por %p161, %p162
    %p164 = scmp.ne.s32.totalorder %s156, %s159
    %p165 = scmp.eq.s32.totalorder %s13, 0
    %p166 = por %p164, %p165
    %p167 = scmp.ne.s32.totalorder %s156, %s159
    %p168 = scmp.eq.s32.totalorder %s18, 3
    %p169 = por %p167, %p168
    %p170 = scmp.ne.s32.totalorder %s159, %s160
    %p171 = scmp.eq.s32.totalorder %s18, 0
    %p172 = por %p170, %p171
    %p173 = scmp.ne.s32.totalorder %s159, %s160
    %p174 = scmp.eq.s32.totalorder %s19, 3
    %p175 = por %p173, %p174
    %p177 = scmp.ne.s32.totalorder %s160, %s176
    %p178 = scmp.eq.s32.totalorder %s19, 0
    %p179 = por %p177, %p178
    %s180 = ssub.s32 %s20, %s32
    %s181 = ssub.s32 %s21, %s28
    %s182 = sor.u32 %s180, %s181
    %p183 = scmp.eq.s32.totalorder %s182, 0
    %s185 = sadd.s32 %s184, 1
    %s186 = scalar_select %p183, %s184, %s185
    %p189 = pneg %p183
    %p190 = scmp.eq.s32.totalorder %s13, 3
    %p191 = por %p189, %p190
    %p192 = scmp.ne.s32.totalorder %s184, %s187
    %p193 = scmp.eq.s32.totalorder %s13, 0
    %p194 = por %p192, %p193
    %p195 = scmp.ne.s32.totalorder %s184, %s187
    %p196 = scmp.eq.s32.totalorder %s18, 3
    %p197 = por %p195, %p196
    %p198 = scmp.ne.s32.totalorder %s187, %s188
    %p199 = scmp.eq.s32.totalorder %s18, 0
    %p200 = por %p198, %p199
    %p201 = scmp.ne.s32.totalorder %s187, %s188
    %p202 = scmp.eq.s32.totalorder %s19, 3
    %p203 = por %p201, %p202
    %p205 = scmp.ne.s32.totalorder %s188, %s204
    %p206 = scmp.eq.s32.totalorder %s19, 0
    %p207 = por %p205, %p206
    %p208 = scmp.le.s32.totalorder 1, %s13
    %p209 = scmp.lt.s32.totalorder %s13, 5
    %p210 = pnand %p208, %p209
    %p211 = pneg %p210
    // Predicated region
    $region9: #{relu_conv_bn_relu_conv.2} parent=5 // pred_check
      _
    $region10: #{relu_conv_bn_relu_conv.2} parent=5 // pred_check_branch
      %213 = sbr.rel (%p210) target = $region12
    $region11: #{relu_conv_bn_relu_conv.2} parent=5 // pred_region
      %s214 = ssub.s32 %s13, 1
      // Predicated region
      $region13: #{relu_conv_bn_relu_conv.2} parent=11 // pred_check
        %p215 = pneg %p74
      $region14: #{relu_conv_bn_relu_conv.2} parent=11 // pred_check_branch
        %217 = sbr.rel (%p215) target = $region16
      $region15: #{relu_conv_bn_relu_conv.2} parent=11 // pred_region
        _
      $region16: #{relu_conv_bn_relu_conv.2} parent=11 // pred_fallthru
        _
      // Predicated region
      $region17: #{relu_conv_bn_relu_conv.2} parent=11 // pred_check
        %p218 = pneg %p95
      $region18: #{relu_conv_bn_relu_conv.2} parent=11 // pred_check_branch
        %220 = sbr.rel (%p218) target = $region20
      $region19: #{relu_conv_bn_relu_conv.2} parent=11 // pred_region
        _
      $region20: #{relu_conv_bn_relu_conv.2} parent=11 // pred_fallthru
        _
      // Predicated region
      $region21: #{relu_conv_bn_relu_conv.2} parent=11 // pred_check
        %p221 = pneg %p116
      $region22: #{relu_conv_bn_relu_conv.2} parent=11 // pred_check_branch
        %223 = sbr.rel (%p221) target = $region24
      $region23: #{relu_conv_bn_relu_conv.2} parent=11 // pred_region
        _
      $region24: #{relu_conv_bn_relu_conv.2} parent=11 // pred_fallthru
        _
    $region12: #{relu_conv_bn_relu_conv.2} parent=5 // pred_fallthru
      _
    %p224 = scmp.lt.s32.totalorder %s13, 4
    // Predicated region
    $region25: #{relu_conv_bn_relu_conv.2} parent=5 // pred_check
      %p225 = pneg %p224
    $region26: #{relu_conv_bn_relu_conv.2} parent=5 // pred_check_branch
      %227 = sbr.rel (%p225) target = $region28
    $region27: #{relu_conv_bn_relu_conv.2} parent=5 // pred_region
      // Predicated region
      $region29: #{relu_conv_bn_relu_conv.2} parent=27 // pred_check
        %p228 = pneg %p47
      $region30: #{relu_conv_bn_relu_conv.2} parent=27 // pred_check_branch
        %230 = sbr.rel (%p228) target = $region32
      $region31: #{relu_conv_bn_relu_conv.2} parent=27 // pred_region
        %p231 = scmp.lt.s32.totalorder %s20, 1
        %s232 = scalar_select %p231, %s20, 1
        %p233 = scmp.lt.s32.totalorder %s21, 1
        %s234 = scalar_select %p233, %s21, 1
        %s235 = smul.addr %s234, 28
        %s236 = smul.addr %s232, 56
        %s237 = sadd.s32 %s235, %s236
        %s238 = smul.addr %s237, 4
        %s239 = scalar_lea.vmem %s0, %s238
      $region32: #{relu_conv_bn_relu_conv.2} parent=27 // pred_fallthru
        _
    $region28: #{relu_conv_bn_relu_conv.2} parent=5 // pred_fallthru
      _
    %p240 = scmp.le.s32.totalorder 1, %s13
    %p241 = scmp.lt.s32.totalorder %s13, 5
    %p242 = pnand %p240, %p241
    %p243 = pneg %p242
    // Predicated region
    $region33: #{relu_conv_bn_relu_conv.2} parent=5 // pred_check
      _
    $region34: #{relu_conv_bn_relu_conv.2} parent=5 // pred_check_branch
      %245 = sbr.rel (%p242) target = $region36
    $region35: #{relu_conv_bn_relu_conv.2} parent=5 // pred_region
      %s246 = ssub.s32 %s13, 1
      %p247 = scmp.lt.s32.totalorder %s22, 1
      %s248 = scalar_select %p247, %s22, 1
      %p249 = scmp.lt.s32.totalorder %s23, 1
      %s250 = scalar_select %p249, %s23, 1
      %s251 = smul.addr %s250, 28
      %s252 = smul.addr %s248, 56
      %s253 = sadd.s32 %s251, %s252
      %s254 = smul.addr %s253, 4
      %s255 = scalar_lea.vmem %s0, %s254
      %p256 = pneg %p53
      %p257 = pneg %p50
      %p258 = pneg %p74
      %p259 = pneg %p71
      %p260 = pneg %p95
      %p261 = pneg %p92
      %p262 = pneg %p116
      %p263 = pneg %p113
      %p264 = pneg %p144
      %p265 = pneg %p141
      %s266 = smul.u32 5, %s23
      %p267 = scmp.lt.s32.totalorder %s22, 1
      %s268 = scalar_select %p267, %s22, 1
      %p269 = scmp.lt.s32.totalorder %s266, 9
      %s270 = scalar_select %p269, %s266, 9
      %s271 = smul.addr %s268, 10
      %s272 = sadd.s32 %s270, %s271
      %s273 = smul.addr %s272, 4
      %s274 = scalar_lea.vmem %s4, %s273
      %p275 = pneg %p172
      %p276 = pneg %p169
      %p277 = scmp.lt.s32.totalorder %s22, 1
      %s278 = scalar_select %p277, %s22, 1
      %p279 = scmp.lt.s32.totalorder %s23, 1
      %s280 = scalar_select %p279, %s23, 1
      %s281 = smul.addr %s278, 2
      %s282 = sadd.s32 %s280, %s281
      %s283 = scalar_lea.vmem %s5, %s282
      %p284 = pneg %p200
      %p285 = pneg %p197
      %p286 = scmp.lt.s32.totalorder %s22, 1
      %s287 = scalar_select %p286, %s22, 1
      %p288 = scmp.lt.s32.totalorder %s23, 1
      %s289 = scalar_select %p288, %s23, 1
      %s290 = smul.addr %s287, 2
      %s291 = sadd.s32 %s289, %s290
      %s292 = scalar_lea.vmem %s6, %s291
      %p293 = scmp.lt.s32.totalorder %s22, 1
      %s294 = scalar_select %p293, %s22, 1
      %p295 = scmp.lt.s32.totalorder %s23, 1
      %s296 = scalar_select %p295, %s23, 1
      %s297 = smul.addr %s296, 28
      %s298 = smul.addr %s294, 56
      %s299 = sadd.s32 %s297, %s298
      %s300 = smul.addr %s299, 4
      %s301 = scalar_lea.vmem %s0, %s300
      %s302 = smul.u32 5, %s23
      %p303 = scmp.lt.s32.totalorder %s22, 1
      %s304 = scalar_select %p303, %s22, 1
      %p305 = scmp.lt.s32.totalorder %s302, 9
      %s306 = scalar_select %p305, %s302, 9
      %s307 = smul.addr %s304, 10
      %s308 = sadd.s32 %s306, %s307
      %s309 = smul.addr %s308, 4
      %s310 = scalar_lea.vmem %s4, %s309
      %s311 = smul.u32 5, %s23
      %p312 = scmp.lt.s32.totalorder %s22, 1
      %s313 = scalar_select %p312, %s22, 1
      %p314 = scmp.lt.s32.totalorder %s23, 1
      %s315 = scalar_select %p314, %s23, 1
      %s316 = smul.addr %s313, 2
      %s317 = sadd.s32 %s315, %s316
      %s318 = scalar_lea.vmem %s5, %s317
      %p319 = scmp.lt.s32.totalorder %s22, 1
      %s320 = scalar_select %p319, %s22, 1
      %p321 = scmp.lt.s32.totalorder %s23, 1
      %s322 = scalar_select %p321, %s23, 1
      %s323 = smul.addr %s320, 2
      %s324 = sadd.s32 %s322, %s323
      %s325 = scalar_lea.vmem %s6, %s324
      %v327 = vld [vmem:[%s301] sm:$0xff]
      %v328 = vld [vmem:[%s301 + $0x10] sm:$0xff]
      %v329 = vld [vmem:[%s301 + $0x20] sm:$0xff]
      %v330 = vld [vmem:[%s301 + $0x30] sm:$0xff]
      %v331 = vld [vmem:[%s301 + $0x40] sm:$0xff]
      %v332 = vld [vmem:[%s1] sm:$0xf]
      %v333 = vld [vmem:[%s1 + $0x4] sm:$0xf]
      %v334 = vld [vmem:[%s1 + $0x8] sm:$0xf]
      %v335 = vld [vmem:[%s1 + $0xc] sm:$0xf]
      %v336 = vld [vmem:[%s1 + $0x10] sm:$0xf]
      %v337 = vld [vmem:[%s1 + $0x14] sm:$0xf]
      %v338 = vld [vmem:[%s1 + $0x18] sm:$0xf]
      %v339 = vld [vmem:[%s1 + $0x1c] sm:$0xf]
      %v340 = vld [vmem:[%s1 + $0x20] sm:$0xf]
      %v341 = vld [vmem:[%s1 + $0x24] sm:$0xf]
      %v342 = vld [vmem:[%s1 + $0x28] sm:$0xf]
      %v343 = vld [vmem:[%s1 + $0x2c] sm:$0xf]
      %v344 = vld [vmem:[%s1 + $0x30] sm:$0xf]
      %v345 = vld [vmem:[%s1 + $0x34] sm:$0xf]
      %v346 = vld [vmem:[%s1 + $0x38] sm:$0xf]
      %v347 = vld [vmem:[%s1 + $0x3c] sm:$0xf]
      %v348 = vld [vmem:[%s1 + $0x40] sm:$0xf]
      %v349 = vld [vmem:[%s1 + $0x44] sm:$0xf]
      %v350 = vld [vmem:[%s1 + $0x48] sm:$0xf]
      %v351 = vld [vmem:[%s1 + $0x4c] sm:$0xf]
      %v352 = vld [vmem:[%s1 + $0x50] sm:$0xf]
      %v353 = vld [vmem:[%s1 + $0x54] sm:$0xf]
      %v354 = vld [vmem:[%s1 + $0x58] sm:$0xf]
      %v355 = vld [vmem:[%s1 + $0x5c] sm:$0xf]
      %v356 = vld [vmem:[%s1 + $0x60] sm:$0xf]
      %v357 = vld [vmem:[%s1 + $0x64] sm:$0xf]
      %v358 = vld [vmem:[%s1 + $0x68] sm:$0xf]
      %v359 = vld [vmem:[%s1 + $0x6c] sm:$0xf]
      %v360 = vld [vmem:[%s1 + $0x70] sm:$0xf]
      %v361 = vld [vmem:[%s1 + $0x74] sm:$0xf]
      %v362 = vld [vmem:[%s1 + $0x78] sm:$0xf]
      %v363 = vld [vmem:[%s1 + $0x7c] sm:$0xf]
      %v364 = vld [vmem:[%s301 + $0x8] sm:$0xff]
      %v365 = vld [vmem:[%s301 + $0x18] sm:$0xff]
      %v366 = vld [vmem:[%s301 + $0x28] sm:$0xff]
      %v367 = vld [vmem:[%s301 + $0x38] sm:$0xff]
      %v368 = vld [vmem:[%s301 + $0x48] sm:$0xff]
      %s369 = scalar_lea.vmem %s1, 128
      %v370 = vld [vmem:[%s369] sm:$0xf]
      %v371 = vld [vmem:[%s369 + $0x4] sm:$0xf]
      %v372 = vld [vmem:[%s369 + $0x8] sm:$0xf]
      %v373 = vld [vmem:[%s369 + $0xc] sm:$0xf]
      %v374 = vld [vmem:[%s369 + $0x10] sm:$0xf]
      %v375 = vld [vmem:[%s369 + $0x14] sm:$0xf]
      %v376 = vld [vmem:[%s369 + $0x18] sm:$0xf]
      %v377 = vld [vmem:[%s369 + $0x1c] sm:$0xf]
      %v378 = vld [vmem:[%s369 + $0x20] sm:$0xf]
      %v379 = vld [vmem:[%s369 + $0x24] sm:$0xf]
      %v380 = vld [vmem:[%s369 + $0x28] sm:$0xf]
      %v381 = vld [vmem:[%s369 + $0x2c] sm:$0xf]
      %v382 = vld [vmem:[%s369 + $0x30] sm:$0xf]
      %v383 = vld [vmem:[%s369 + $0x34] sm:$0xf]
      %v384 = vld [vmem:[%s369 + $0x38] sm:$0xf]
      %v385 = vld [vmem:[%s369 + $0x3c] sm:$0xf]
      %v386 = vld [vmem:[%s369 + $0x40] sm:$0xf]
      %v387 = vld [vmem:[%s369 + $0x44] sm:$0xf]
      %v388 = vld [vmem:[%s369 + $0x48] sm:$0xf]
      %v389 = vld [vmem:[%s369 + $0x4c] sm:$0xf]
      %v390 = vld [vmem:[%s369 + $0x50] sm:$0xf]
      %v391 = vld [vmem:[%s369 + $0x54] sm:$0xf]
      %v392 = vld [vmem:[%s369 + $0x58] sm:$0xf]
      %v393 = vld [vmem:[%s369 + $0x5c] sm:$0xf]
      %v394 = vld [vmem:[%s369 + $0x60] sm:$0xf]
      %v395 = vld [vmem:[%s369 + $0x64] sm:$0xf]
      %v396 = vld [vmem:[%s369 + $0x68] sm:$0xf]
      %v397 = vld [vmem:[%s369 + $0x6c] sm:$0xf]
      %v398 = vld [vmem:[%s369 + $0x70] sm:$0xf]
      %v399 = vld [vmem:[%s369 + $0x74] sm:$0xf]
      %v400 = vld [vmem:[%s369 + $0x78] sm:$0xf]
      %v401 = vld [vmem:[%s369 + $0x7c] sm:$0xf]
      %v407 = vunpack.c.l.b16 %v364
      %v408 = vunpack.c.h.b16 %v364
      %v409 = vunpack.c.l.b16 %v365
      %v410 = vunpack.c.h.b16 %v365
      %v411 = vunpack.c.l.b16 %v366
      %v412 = vunpack.c.h.b16 %v366
      %v413 = vunpack.c.l.b16 %v367
      %v414 = vunpack.c.h.b16 %v367
      %v415 = vunpack.c.l.b16 %v368
      %v416 = vunpack.c.h.b16 %v368
      %v417 = vpack.c.b16 %v409, %v407
      %v418 = vpack.c.b16 %v410, %v408
      %v419 = vpack.c.b16 %v413, %v411
      %v420 = vpack.c.b16 %v414, %v412
      %v421 = vpack.c.b16 %v415, %v415
      %v422 = vpack.c.b16 %v416, %v416
      %v461 = vunpack.c.l.b16 %v370
      %v462 = vunpack.c.l.b16 %v371
      %v463 = vunpack.c.l.b16 %v372
      %v464 = vunpack.c.l.b16 %v373
      %v465 = vunpack.c.l.b16 %v374
      %v466 = vunpack.c.l.b16 %v375
      %v467 = vunpack.c.l.b16 %v376
      %v468 = vunpack.c.l.b16 %v377
      %v469 = vunpack.c.l.b16 %v378
      %v470 = vunpack.c.l.b16 %v379
      %v471 = vunpack.c.l.b16 %v380
      %v472 = vunpack.c.l.b16 %v381
      %v473 = vunpack.c.l.b16 %v382
      %v474 = vunpack.c.l.b16 %v383
      %v475 = vunpack.c.l.b16 %v384
      %v476 = vunpack.c.l.b16 %v385
      %v477 = vunpack.c.l.b16 %v386
      %v478 = vunpack.c.l.b16 %v387
      %v479 = vunpack.c.l.b16 %v388
      %v480 = vunpack.c.l.b16 %v389
      %v481 = vunpack.c.l.b16 %v390
      %v482 = vunpack.c.l.b16 %v391
      %v483 = vunpack.c.l.b16 %v392
      %v484 = vunpack.c.l.b16 %v393
      %v485 = vunpack.c.l.b16 %v394
      %v486 = vunpack.c.l.b16 %v395
      %v487 = vunpack.c.l.b16 %v396
      %v488 = vunpack.c.l.b16 %v397
      %v489 = vunpack.c.l.b16 %v398
      %v490 = vunpack.c.l.b16 %v399
      %v491 = vunpack.c.l.b16 %v400
      %v492 = vunpack.c.l.b16 %v401
      %v493 = vpack.c.b16 %v462, %v461
      %v494 = vpack.c.b16 %v464, %v463
      %v495 = vpack.c.b16 %v466, %v465
      %v496 = vpack.c.b16 %v468, %v467
      %v497 = vpack.c.b16 %v470, %v469
      %v498 = vpack.c.b16 %v472, %v471
      %v499 = vpack.c.b16 %v474, %v473
      %v500 = vpack.c.b16 %v476, %v475
      %v501 = vpack.c.b16 %v478, %v477
      %v502 = vpack.c.b16 %v480, %v479
      %v503 = vpack.c.b16 %v482, %v481
      %v504 = vpack.c.b16 %v484, %v483
      %v505 = vpack.c.b16 %v486, %v485
      %v506 = vpack.c.b16 %v488, %v487
      %v507 = vpack.c.b16 %v490, %v489
      %v508 = vpack.c.b16 %v492, %v491
      %525 = vmatprep.subr.bf16.mxu0 0
      %526 = vmatpush1.bf16.msra.mxu0 %v500
      %527 = vmatprep.subr.bf16.mxu0 0
      %528 = vmatpush1.bf16.msra.mxu0 %v499
      %529 = vmatprep.subr.bf16.mxu0 0
      %530 = vmatpush1.bf16.msra.mxu0 %v498
      %531 = vmatprep.subr.bf16.mxu0 0
      %532 = vmatpush1.bf16.msra.mxu0 %v497
      %533 = vmatprep.subr.bf16.mxu0 0
      %534 = vmatpush1.bf16.msra.mxu0 %v496
      %535 = vmatprep.subr.bf16.mxu0 0
      %536 = vmatpush1.bf16.msra.mxu0 %v495
      %537 = vmatprep.subr.bf16.mxu0 0
      %538 = vmatpush1.bf16.msra.mxu0 %v494
      %539 = vmatprep.subr.bf16.mxu0 0
      %540 = vmatpush1.bf16.msra.mxu0 %v493
      %541 = vmatprep.subr.bf16.mxu0 0
      %542 = vmatpush2.bf16.msra.mxu0 %v508
      %543 = vmatprep.subr.bf16.mxu0 0
      %544 = vmatpush2.bf16.msra.mxu0 %v507
      %545 = vmatprep.subr.bf16.mxu0 0
      %546 = vmatpush2.bf16.msra.mxu0 %v506
      %547 = vmatprep.subr.bf16.mxu0 0
      %548 = vmatpush2.bf16.msra.mxu0 %v505
      %549 = vmatprep.subr.bf16.mxu0 0
      %550 = vmatpush2.bf16.msra.mxu0 %v504
      %551 = vmatprep.subr.bf16.mxu0 0
      %552 = vmatpush2.bf16.msra.mxu0 %v503
      %553 = vmatprep.subr.bf16.mxu0 0
      %554 = vmatpush2.bf16.msra.mxu0 %v502
      %555 = vmatprep.subr.bf16.mxu0 0
      %556 = vmatpush2.bf16.msra.mxu0 %v501
      %557 = vmatprep.mubr.bf16.mxu0 %v418
      %558 = vmatmul.mubr.bf16.gmra.mxu0 %v417
      %v559 = vpop.f32.mrf.mxu0
      %v560 = vadd.f32 0.0, %v559
      %v561 = vpop.f32.mrf.mxu0
      %v562 = vpop.f32.mrf.mxu0
      %v563 = vadd.f32 0.0, %v562
      %v564 = vpop.f32.mrf.mxu0
      %565 = vmatprep.mubr.bf16.mxu0 %v420
      %566 = vmatmul.mubr.bf16.gmra.mxu0 %v419
      %v567 = vpop.f32.mrf.mxu0
      %v568 = vadd.f32 0.0, %v567
      %v569 = vpop.f32.mrf.mxu0
      %v570 = vpop.f32.mrf.mxu0
      %v571 = vadd.f32 0.0, %v570
      %v572 = vpop.f32.mrf.mxu0
      %573 = vmatprep.mubr.bf16.mxu0 %v422
      %574 = vmatmul.mubr.bf16.gmra.mxu0 %v421
      %v575 = vpop.f32.mrf.mxu0
      %v576 = vadd.f32 0.0, %v575
      %v577 = vpop.f32.mrf.mxu0
      %v578 = vpop.f32.mrf.mxu0
      %v579 = vpop.f32.mrf.mxu0
      %580 = vdwg.mxu0
      %v586 = vunpack.c.l.b16 %v327
      %v587 = vunpack.c.h.b16 %v327
      %v588 = vunpack.c.l.b16 %v328
      %v589 = vunpack.c.h.b16 %v328
      %v590 = vunpack.c.l.b16 %v329
      %v591 = vunpack.c.h.b16 %v329
      %v592 = vunpack.c.l.b16 %v330
      %v593 = vunpack.c.h.b16 %v330
      %v594 = vunpack.c.l.b16 %v331
      %v595 = vunpack.c.h.b16 %v331
      %v596 = vpack.c.b16 %v588, %v586
      %v597 = vpack.c.b16 %v589, %v587
      %v598 = vpack.c.b16 %v592, %v590
      %v599 = vpack.c.b16 %v593, %v591
      %v600 = vpack.c.b16 %v594, %v594
      %v601 = vpack.c.b16 %v595, %v595
      %v640 = vunpack.c.l.b16 %v332
      %v641 = vunpack.c.l.b16 %v333
      %v642 = vunpack.c.l.b16 %v334
      %v643 = vunpack.c.l.b16 %v335
      %v644 = vunpack.c.l.b16 %v336
      %v645 = vunpack.c.l.b16 %v337
      %v646 = vunpack.c.l.b16 %v338
      %v647 = vunpack.c.l.b16 %v339
      %v648 = vunpack.c.l.b16 %v340
      %v649 = vunpack.c.l.b16 %v341
      %v650 = vunpack.c.l.b16 %v342
      %v651 = vunpack.c.l.b16 %v343
      %v652 = vunpack.c.l.b16 %v344
      %v653 = vunpack.c.l.b16 %v345
      %v654 = vunpack.c.l.b16 %v346
      %v655 = vunpack.c.l.b16 %v347
      %v656 = vunpack.c.l.b16 %v348
      %v657 = vunpack.c.l.b16 %v349
      %v658 = vunpack.c.l.b16 %v350
      %v659 = vunpack.c.l.b16 %v351
      %v660 = vunpack.c.l.b16 %v352
      %v661 = vunpack.c.l.b16 %v353
      %v662 = vunpack.c.l.b16 %v354
      %v663 = vunpack.c.l.b16 %v355
      %v664 = vunpack.c.l.b16 %v356
      %v665 = vunpack.c.l.b16 %v357
      %v666 = vunpack.c.l.b16 %v358
      %v667 = vunpack.c.l.b16 %v359
      %v668 = vunpack.c.l.b16 %v360
      %v669 = vunpack.c.l.b16 %v361
      %v670 = vunpack.c.l.b16 %v362
      %v671 = vunpack.c.l.b16 %v363
      %v672 = vpack.c.b16 %v641, %v640
      %v673 = vpack.c.b16 %v643, %v642
      %v674 = vpack.c.b16 %v645, %v644
      %v675 = vpack.c.b16 %v647, %v646
      %v676 = vpack.c.b16 %v649, %v648
      %v677 = vpack.c.b16 %v651, %v650
      %v678 = vpack.c.b16 %v653, %v652
      %v679 = vpack.c.b16 %v655, %v654
      %v680 = vpack.c.b16 %v657, %v656
      %v681 = vpack.c.b16 %v659, %v658
      %v682 = vpack.c.b16 %v661, %v660
      %v683 = vpack.c.b16 %v663, %v662
      %v684 = vpack.c.b16 %v665, %v664
      %v685 = vpack.c.b16 %v667, %v666
      %v686 = vpack.c.b16 %v669, %v668
      %v687 = vpack.c.b16 %v671, %v670
      %704 = vmatprep.subr.bf16.mxu0 0
      %705 = vmatpush1.bf16.msra.mxu0 %v679
      %706 = vmatprep.subr.bf16.mxu0 0
      %707 = vmatpush1.bf16.msra.mxu0 %v678
      %708 = vmatprep.subr.bf16.mxu0 0
      %709 = vmatpush1.bf16.msra.mxu0 %v677
      %710 = vmatprep.subr.bf16.mxu0 0
      %711 = vmatpush1.bf16.msra.mxu0 %v676
      %712 = vmatprep.subr.bf16.mxu0 0
      %713 = vmatpush1.bf16.msra.mxu0 %v675
      %714 = vmatprep.subr.bf16.mxu0 0
      %715 = vmatpush1.bf16.msra.mxu0 %v674
      %716 = vmatprep.subr.bf16.mxu0 0
      %717 = vmatpush1.bf16.msra.mxu0 %v673
      %718 = vmatprep.subr.bf16.mxu0 0
      %719 = vmatpush1.bf16.msra.mxu0 %v672
      %720 = vmatprep.subr.bf16.mxu0 0
      %721 = vmatpush2.bf16.msra.mxu0 %v687
      %722 = vmatprep.subr.bf16.mxu0 0
      %723 = vmatpush2.bf16.msra.mxu0 %v686
      %724 = vmatprep.subr.bf16.mxu0 0
      %725 = vmatpush2.bf16.msra.mxu0 %v685
      %726 = vmatprep.subr.bf16.mxu0 0
      %727 = vmatpush2.bf16.msra.mxu0 %v684
      %728 = vmatprep.subr.bf16.mxu0 0
      %729 = vmatpush2.bf16.msra.mxu0 %v683
      %730 = vmatprep.subr.bf16.mxu0 0
      %731 = vmatpush2.bf16.msra.mxu0 %v682
      %732 = vmatprep.subr.bf16.mxu0 0
      %733 = vmatpush2.bf16.msra.mxu0 %v681
      %734 = vmatprep.subr.bf16.mxu0 0
      %735 = vmatpush2.bf16.msra.mxu0 %v680
      %736 = vmatprep.mubr.bf16.mxu0 %v597
      %737 = vmatmul.mubr.bf16.gmra.mxu0 %v596
      %v738 = vpop.f32.mrf.mxu0
      %v739 = vadd.f32 %v560, %v738
      %v740 = vpop.f32.mrf.mxu0
      %v741 = vpop.f32.mrf.mxu0
      %v742 = vadd.f32 %v563, %v741
      %v743 = vpop.f32.mrf.mxu0
      %744 = vmatprep.mubr.bf16.mxu0 %v599
      %745 = vmatmul.mubr.bf16.gmra.mxu0 %v598
      %v746 = vpop.f32.mrf.mxu0
      %v747 = vadd.f32 %v568, %v746
      %v748 = vpop.f32.mrf.mxu0
      %v749 = vpop.f32.mrf.mxu0
      %v750 = vadd.f32 %v571, %v749
      %v751 = vpop.f32.mrf.mxu0
      %752 = vmatprep.mubr.bf16.mxu0 %v601
      %753 = vmatmul.mubr.bf16.gmra.mxu0 %v600
      %v754 = vpop.f32.mrf.mxu0
      %v755 = vadd.f32 %v576, %v754
      %v756 = vpop.f32.mrf.mxu0
      %v757 = vpop.f32.mrf.mxu0
      %v758 = vpop.f32.mrf.mxu0
      %759 = vdwg.mxu0
      %v760 = vld [vmem:[%s301 + $0x10] sm:$0xff]
      %v761 = vld [vmem:[%s301 + $0x20] sm:$0xff]
      %v762 = vld [vmem:[%s301 + $0x30] sm:$0xff]
      %v763 = vld [vmem:[%s301 + $0x40] sm:$0xff]
      %v764 = vld [vmem:[%s301 + $0x50] sm:$0xff]
      %v765 = vld [vmem:[%s301 + $0x60] sm:$0x11]
      %s766 = scalar_lea.vmem %s1, 256
      %v767 = vld [vmem:[%s766] sm:$0xf]
      %v768 = vld [vmem:[%s766 + $0x4] sm:$0xf]
      %v769 = vld [vmem:[%s766 + $0x8] sm:$0xf]
      %v770 = vld [vmem:[%s766 + $0xc] sm:$0xf]
      %v771 = vld [vmem:[%s766 + $0x10] sm:$0xf]
      %v772 = vld [vmem:[%s766 + $0x14] sm:$0xf]
      %v773 = vld [vmem:[%s766 + $0x18] sm:$0xf]
      %v774 = vld [vmem:[%s766 + $0x1c] sm:$0xf]
      %v775 = vld [vmem:[%s766 + $0x20] sm:$0xf]
      %v776 = vld [vmem:[%s766 + $0x24] sm:$0xf]
      %v777 = vld [vmem:[%s766 + $0x28] sm:$0xf]
      %v778 = vld [vmem:[%s766 + $0x2c] sm:$0xf]
      %v779 = vld [vmem:[%s766 + $0x30] sm:$0xf]
      %v780 = vld [vmem:[%s766 + $0x34] sm:$0xf]
      %v781 = vld [vmem:[%s766 + $0x38] sm:$0xf]
      %v782 = vld [vmem:[%s766 + $0x3c] sm:$0xf]
      %v783 = vld [vmem:[%s766 + $0x40] sm:$0xf]
      %v784 = vld [vmem:[%s766 + $0x44] sm:$0xf]
      %v785 = vld [vmem:[%s766 + $0x48] sm:$0xf]
      %v786 = vld [vmem:[%s766 + $0x4c] sm:$0xf]
      %v787 = vld [vmem:[%s766 + $0x50] sm:$0xf]
      %v788 = vld [vmem:[%s766 + $0x54] sm:$0xf]
      %v789 = vld [vmem:[%s766 + $0x58] sm:$0xf]
      %v790 = vld [vmem:[%s766 + $0x5c] sm:$0xf]
      %v791 = vld [vmem:[%s766 + $0x60] sm:$0xf]
      %v792 = vld [vmem:[%s766 + $0x64] sm:$0xf]
      %v793 = vld [vmem:[%s766 + $0x68] sm:$0xf]
      %v794 = vld [vmem:[%s766 + $0x6c] sm:$0xf]
      %v795 = vld [vmem:[%s766 + $0x70] sm:$0xf]
      %v796 = vld [vmem:[%s766 + $0x74] sm:$0xf]
      %v797 = vld [vmem:[%s766 + $0x78] sm:$0xf]
      %v798 = vld [vmem:[%s766 + $0x7c] sm:$0xf]
      %v805 = vunpack.c.l.b16 %v760
      %v806 = vunpack.c.h.b16 %v760
      %v807 = vunpack.c.l.b16 %v761
      %v808 = vunpack.c.h.b16 %v761
      %v809 = vunpack.c.l.b16 %v762
      %v810 = vunpack.c.h.b16 %v762
      %v811 = vunpack.c.l.b16 %v763
      %v812 = vunpack.c.h.b16 %v763
      %v813 = vunpack.c.l.b16 %v764
      %v814 = vunpack.c.h.b16 %v764
      %v815 = vunpack.c.l.b16 %v765
      %v816 = vunpack.c.h.b16 %v765
      %v817 = vpack.c.b16 %v807, %v805
      %v818 = vpack.c.b16 %v808, %v806
      %v819 = vpack.c.b16 %v811, %v809
      %v820 = vpack.c.b16 %v812, %v810
      %v821 = vpack.c.b16 %v815, %v813
      %v822 = vpack.c.b16 %v816, %v814
      %vm823 = vsmask.f32 7424
      %v825 = vshrl.u32 %v817, 16
      %v827 = vshll.u32 %v817, 16
      %v829 = vrot.slane %v827, 1
      %v830 = vor.u32 %v825, %v829
      %v832 = vshll.u32 %v819, 16
      %v834 = vrot.slane %v832, 1
      %v835 = vsel %vm823, %v830, %v834
      %v837 = vshrl.u32 %v818, 16
      %v839 = vshll.u32 %v818, 16
      %v841 = vrot.slane %v839, 1
      %v842 = vor.u32 %v837, %v841
      %v844 = vshll.u32 %v820, 16
      %v846 = vrot.slane %v844, 1
      %v847 = vsel %vm823, %v842, %v846
      %v848 = vshrl.u32 %v819, 16
      %v850 = vor.u32 %v848, %v834
      %v852 = vshll.u32 %v821, 16
      %v854 = vrot.slane %v852, 1
      %v855 = vsel %vm823, %v850, %v854
      %v856 = vshrl.u32 %v820, 16
      %v858 = vor.u32 %v856, %v846
      %v860 = vshll.u32 %v822, 16
      %v862 = vrot.slane %v860, 1
      %v863 = vsel %vm823, %v858, %v862
      %v864 = vshrl.u32 %v821, 16
      %v866 = vor.u32 %v864, %v854
      %v867 = vshrl.u32 %v822, 16
      %v869 = vor.u32 %v867, %v862
      %v908 = vunpack.c.l.b16 %v767
      %v909 = vunpack.c.l.b16 %v768
      %v910 = vunpack.c.l.b16 %v769
      %v911 = vunpack.c.l.b16 %v770
      %v912 = vunpack.c.l.b16 %v771
      %v913 = vunpack.c.l.b16 %v772
      %v914 = vunpack.c.l.b16 %v773
      %v915 = vunpack.c.l.b16 %v774
      %v916 = vunpack.c.l.b16 %v775
      %v917 = vunpack.c.l.b16 %v776
      %v918 = vunpack.c.l.b16 %v777
      %v919 = vunpack.c.l.b16 %v778
      %v920 = vunpack.c.l.b16 %v779
      %v921 = vunpack.c.l.b16 %v780
      %v922 = vunpack.c.l.b16 %v781
      %v923 = vunpack.c.l.b16 %v782
      %v924 = vunpack.c.l.b16 %v783
      %v925 = vunpack.c.l.b16 %v784
      %v926 = vunpack.c.l.b16 %v785
      %v927 = vunpack.c.l.b16 %v786
      %v928 = vunpack.c.l.b16 %v787
      %v929 = vunpack.c.l.b16 %v788
      %v930 = vunpack.c.l.b16 %v789
      %v931 = vunpack.c.l.b16 %v790
      %v932 = vunpack.c.l.b16 %v791
      %v933 = vunpack.c.l.b16 %v792
      %v934 = vunpack.c.l.b16 %v793
      %v935 = vunpack.c.l.b16 %v794
      %v936 = vunpack.c.l.b16 %v795
      %v937 = vunpack.c.l.b16 %v796
      %v938 = vunpack.c.l.b16 %v797
      %v939 = vunpack.c.l.b16 %v798
      %v940 = vpack.c.b16 %v909, %v908
      %v941 = vpack.c.b16 %v911, %v910
      %v942 = vpack.c.b16 %v913, %v912
      %v943 = vpack.c.b16 %v915, %v914
      %v944 = vpack.c.b16 %v917, %v916
      %v945 = vpack.c.b16 %v919, %v918
      %v946 = vpack.c.b16 %v921, %v920
      %v947 = vpack.c.b16 %v923, %v922
      %v948 = vpack.c.b16 %v925, %v924
      %v949 = vpack.c.b16 %v927, %v926
      %v950 = vpack.c.b16 %v929, %v928
      %v951 = vpack.c.b16 %v931, %v930
      %v952 = vpack.c.b16 %v933, %v932
      %v953 = vpack.c.b16 %v935, %v934
      %v954 = vpack.c.b16 %v937, %v936
      %v955 = vpack.c.b16 %v939, %v938
      %972 = vmatprep.subr.bf16.mxu0 0
      %973 = vmatpush1.bf16.msra.mxu0 %v947
      %974 = vmatprep.subr.bf16.mxu0 0
      %975 = vmatpush1.bf16.msra.mxu0 %v946
      %976 = vmatprep.subr.bf16.mxu0 0
      %977 = vmatpush1.bf16.msra.mxu0 %v945
      %978 = vmatprep.subr.bf16.mxu0 0
      %979 = vmatpush1.bf16.msra.mxu0 %v944
      %980 = vmatprep.subr.bf16.mxu0 0
      %981 = vmatpush1.bf16.msra.mxu0 %v943
      %982 = vmatprep.subr.bf16.mxu0 0
      %983 = vmatpush1.bf16.msra.mxu0 %v942
      %984 = vmatprep.subr.bf16.mxu0 0
      %985 = vmatpush1.bf16.msra.mxu0 %v941
      %986 = vmatprep.subr.bf16.mxu0 0
      %987 = vmatpush1.bf16.msra.mxu0 %v940
      %988 = vmatprep.subr.bf16.mxu0 0
      %989 = vmatpush2.bf16.msra.mxu0 %v955
      %990 = vmatprep.subr.bf16.mxu0 0
      %991 = vmatpush2.bf16.msra.mxu0 %v954
      %992 = vmatprep.subr.bf16.mxu0 0
      %993 = vmatpush2.bf16.msra.mxu0 %v953
      %994 = vmatprep.subr.bf16.mxu0 0
      %995 = vmatpush2.bf16.msra.mxu0 %v952
      %996 = vmatprep.subr.bf16.mxu0 0
      %997 = vmatpush2.bf16.msra.mxu0 %v951
      %998 = vmatprep.subr.bf16.mxu0 0
      %999 = vmatpush2.bf16.msra.mxu0 %v950
      %1000 = vmatprep.subr.bf16.mxu0 0
      %1001 = vmatpush2.bf16.msra.mxu0 %v949
      %1002 = vmatprep.subr.bf16.mxu0 0
      %1003 = vmatpush2.bf16.msra.mxu0 %v948
      %1004 = vmatprep.mubr.bf16.mxu0 %v847
      %1005 = vmatmul.mubr.bf16.gmra.mxu0 %v835
      %v1006 = vpop.f32.mrf.mxu0
      %v1007 = vadd.f32 0.0, %v1006
      %v1008 = vpop.f32.mrf.mxu0
      %v1009 = vpop.f32.mrf.mxu0
      %v1010 = vadd.f32 0.0, %v1009
      %v1011 = vpop.f32.mrf.mxu0
      %1012 = vmatprep.mubr.bf16.mxu0 %v863
      %1013 = vmatmul.mubr.bf16.gmra.mxu0 %v855
      %v1014 = vpop.f32.mrf.mxu0
      %v1015 = vadd.f32 0.0, %v1014
      %v1016 = vpop.f32.mrf.mxu0
      %v1017 = vpop.f32.mrf.mxu0
      %v1018 = vadd.f32 0.0, %v1017
      %v1019 = vpop.f32.mrf.mxu0
      %1020 = vmatprep.mubr.bf16.mxu0 %v869
      %1021 = vmatmul.mubr.bf16.gmra.mxu0 %v866
      %v1022 = vpop.f32.mrf.mxu0
      %v1023 = vadd.f32 0.0, %v1022
      %v1024 = vpop.f32.mrf.mxu0
      %v1025 = vpop.f32.mrf.mxu0
      %v1026 = vpop.f32.mrf.mxu0
      %1027 = vdwg.mxu0
      %v1028 = vadd.f32 %v739, %v1007
      %v1029 = vadd.f32 %v742, %v1010
      %v1030 = vadd.f32 %v747, %v1015
      %v1031 = vadd.f32 %v750, %v1018
      %v1032 = vadd.f32 %v755, %v1023
      %v1033 = vld [vmem:[%s301] sm:$0xf]
      %v1034 = vld [vmem:[%s301 + $0x10] sm:$0xf]
      %v1035 = vld [vmem:[%s301 + $0x20] sm:$0xf]
      %v1036 = vld [vmem:[%s301 + $0x30] sm:$0xf]
      %v1037 = vld [vmem:[%s301 + $0x40] sm:$0xf]
      %v1038 = vld [vmem:[%s301 + $0x50] sm:$0x1]
      %v1039 = vld [vmem:[%s2] sm:$0xf]
      %v1040 = vld [vmem:[%s2 + $0x4] sm:$0xf]
      %v1041 = vld [vmem:[%s2 + $0x8] sm:$0xf]
      %v1042 = vld [vmem:[%s2 + $0xc] sm:$0xf]
      %v1043 = vld [vmem:[%s2 + $0x10] sm:$0xf]
      %v1044 = vld [vmem:[%s2 + $0x14] sm:$0xf]
      %v1045 = vld [vmem:[%s2 + $0x18] sm:$0xf]
      %v1046 = vld [vmem:[%s2 + $0x1c] sm:$0xf]
      %v1047 = vld [vmem:[%s2 + $0x20] sm:$0xf]
      %v1048 = vld [vmem:[%s2 + $0x24] sm:$0xf]
      %v1049 = vld [vmem:[%s2 + $0x28] sm:$0xf]
      %v1050 = vld [vmem:[%s2 + $0x2c] sm:$0xf]
      %v1051 = vld [vmem:[%s2 + $0x30] sm:$0xf]
      %v1052 = vld [vmem:[%s2 + $0x34] sm:$0xf]
      %v1053 = vld [vmem:[%s2 + $0x38] sm:$0xf]
      %v1054 = vld [vmem:[%s2 + $0x3c] sm:$0xf]
      %v1061 = vunpack.c.l.b16 %v1033
      %v1062 = vunpack.c.l.b16 %v1034
      %v1063 = vunpack.c.l.b16 %v1035
      %v1064 = vunpack.c.l.b16 %v1036
      %v1065 = vunpack.c.l.b16 %v1037
      %v1066 = vunpack.c.l.b16 %v1038
      %v1067 = vpack.c.b16 %v1062, %v1061
      %v1068 = vpack.c.b16 %v1064, %v1063
      %v1069 = vpack.c.b16 %v1066, %v1065
      %v1071 = vshrl.u32 %v1067, 16
      %v1073 = vshll.u32 %v1067, 16
      %v1075 = vrot.slane %v1073, 1
      %v1076 = vor.u32 %v1071, %v1075
      %v1078 = vshll.u32 %v1068, 16
      %v1080 = vrot.slane %v1078, 1
      %v1081 = vsel %vm823, %v1076, %v1080
      %v1082 = vshrl.u32 %v1068, 16
      %v1084 = vor.u32 %v1082, %v1080
      %v1086 = vshll.u32 %v1069, 16
      %v1088 = vrot.slane %v1086, 1
      %v1089 = vsel %vm823, %v1084, %v1088
      %v1090 = vshrl.u32 %v1069, 16
      %v1092 = vor.u32 %v1090, %v1088
      %v1112 = vunpack.c.l.b16 %v1039
      %v1113 = vunpack.c.l.b16 %v1040
      %v1114 = vunpack.c.l.b16 %v1041
      %v1115 = vunpack.c.l.b16 %v1042
      %v1116 = vunpack.c.l.b16 %v1043
      %v1117 = vunpack.c.l.b16 %v1044
      %v1118 = vunpack.c.l.b16 %v1045
      %v1119 = vunpack.c.l.b16 %v1046
      %v1120 = vunpack.c.l.b16 %v1047
      %v1121 = vunpack.c.l.b16 %v1048
      %v1122 = vunpack.c.l.b16 %v1049
      %v1123 = vunpack.c.l.b16 %v1050
      %v1124 = vunpack.c.l.b16 %v1051
      %v1125 = vunpack.c.l.b16 %v1052
      %v1126 = vunpack.c.l.b16 %v1053
      %v1127 = vunpack.c.l.b16 %v1054
      %v1128 = vpack.c.b16 %v1113, %v1112
      %v1129 = vpack.c.b16 %v1115, %v1114
      %v1130 = vpack.c.b16 %v1117, %v1116
      %v1131 = vpack.c.b16 %v1119, %v1118
      %v1132 = vpack.c.b16 %v1121, %v1120
      %v1133 = vpack.c.b16 %v1123, %v1122
      %v1134 = vpack.c.b16 %v1125, %v1124
      %v1135 = vpack.c.b16 %v1127, %v1126
      %1144 = vmatprep.subr.bf16.mxu0 0
      %1145 = vmatpush1.bf16.msra.mxu0 %v1135
      %1146 = vmatprep.subr.bf16.mxu0 0
      %1147 = vmatpush1.bf16.msra.mxu0 %v1134
      %1148 = vmatprep.subr.bf16.mxu0 0
      %1149 = vmatpush1.bf16.msra.mxu0 %v1133
      %1150 = vmatprep.subr.bf16.mxu0 0
      %1151 = vmatpush1.bf16.msra.mxu0 %v1132
      %1152 = vmatprep.subr.bf16.mxu0 0
      %1153 = vmatpush1.bf16.msra.mxu0 %v1131
      %1154 = vmatprep.subr.bf16.mxu0 0
      %1155 = vmatpush1.bf16.msra.mxu0 %v1130
      %1156 = vmatprep.subr.bf16.mxu0 0
      %1157 = vmatpush1.bf16.msra.mxu0 %v1129
      %1158 = vmatprep.subr.bf16.mxu0 0
      %1159 = vmatpush1.bf16.msra.mxu0 %v1128
      %1160 = vmatprep.subr.bf16.mxu0 0
      %1161 = vmatpush2.bf16.msra.mxu0 0
      %1162 = vmatprep.subr.bf16.mxu0 0
      %1163 = vmatpush2.bf16.msra.mxu0 0
      %1164 = vmatprep.subr.bf16.mxu0 0
      %1165 = vmatpush2.bf16.msra.mxu0 0
      %1166 = vmatprep.subr.bf16.mxu0 0
      %1167 = vmatpush2.bf16.msra.mxu0 0
      %1168 = vmatprep.subr.bf16.mxu0 0
      %1169 = vmatpush2.bf16.msra.mxu0 0
      %1170 = vmatprep.subr.bf16.mxu0 0
      %1171 = vmatpush2.bf16.msra.mxu0 0
      %1172 = vmatprep.subr.bf16.mxu0 0
      %1173 = vmatpush2.bf16.msra.mxu0 0
      %1174 = vmatprep.subr.bf16.mxu0 0
      %1175 = vmatpush2.bf16.msra.mxu0 0
      %1176 = vmatprep.mubr.bf16.mxu0 0
      %1177 = vmatmul.mubr.bf16.gmra.mxu0 %v1081
      %v1178 = vpop.f32.mrf.mxu0
      %v1179 = vadd.f32 0.0, %v1178
      %v1180 = vpop.f32.mrf.mxu0
      %v1181 = vpop.f32.mrf.mxu0
      %v1182 = vadd.f32 0.0, %v1181
      %v1183 = vpop.f32.mrf.mxu0
      %1184 = vmatprep.mubr.bf16.mxu0 0
      %1185 = vmatmul.mubr.bf16.gmra.mxu0 %v1089
      %v1186 = vpop.f32.mrf.mxu0
      %v1187 = vadd.f32 0.0, %v1186
      %v1188 = vpop.f32.mrf.mxu0
      %v1189 = vpop.f32.mrf.mxu0
      %v1190 = vadd.f32 0.0, %v1189
      %v1191 = vpop.f32.mrf.mxu0
      %1192 = vmatprep.mubr.bf16.mxu0 0
      %1193 = vmatmul.mubr.bf16.gmra.mxu0 %v1092
      %v1194 = vpop.f32.mrf.mxu0
      %v1195 = vadd.f32 0.0, %v1194
      %v1196 = vpop.f32.mrf.mxu0
      %v1197 = vpop.f32.mrf.mxu0
      %v1198 = vpop.f32.mrf.mxu0
      %1199 = vdwg.mxu0
      %v1200 = vadd.f32 %v1028, %v1179
      %v1201 = vadd.f32 %v1029, %v1182
      %v1202 = vadd.f32 %v1030, %v1187
      %v1203 = vadd.f32 %v1031, %v1190
      %v1204 = vadd.f32 %v1032, %v1195
      %v1205 = vld [vmem:[%s301 + $0x8] sm:$0xf]
      %v1206 = vld [vmem:[%s301 + $0x18] sm:$0xf]
      %v1207 = vld [vmem:[%s301 + $0x28] sm:$0xf]
      %v1208 = vld [vmem:[%s301 + $0x38] sm:$0xf]
      %v1209 = vld [vmem:[%s301 + $0x48] sm:$0xf]
      %v1210 = vld [vmem:[%s301 + $0x58] sm:$0x1]
      %s1211 = scalar_lea.vmem %s2, 64
      %v1212 = vld [vmem:[%s1211] sm:$0xf]
      %v1213 = vld [vmem:[%s1211 + $0x4] sm:$0xf]
      %v1214 = vld [vmem:[%s1211 + $0x8] sm:$0xf]
      %v1215 = vld [vmem:[%s1211 + $0xc] sm:$0xf]
      %v1216 = vld [vmem:[%s1211 + $0x10] sm:$0xf]
      %v1217 = vld [vmem:[%s1211 + $0x14] sm:$0xf]
      %v1218 = vld [vmem:[%s1211 + $0x18] sm:$0xf]
      %v1219 = vld [vmem:[%s1211 + $0x1c] sm:$0xf]
      %v1220 = vld [vmem:[%s1211 + $0x20] sm:$0xf]
      %v1221 = vld [vmem:[%s1211 + $0x24] sm:$0xf]
      %v1222 = vld [vmem:[%s1211 + $0x28] sm:$0xf]
      %v1223 = vld [vmem:[%s1211 + $0x2c] sm:$0xf]
      %v1224 = vld [vmem:[%s1211 + $0x30] sm:$0xf]
      %v1225 = vld [vmem:[%s1211 + $0x34] sm:$0xf]
      %v1226 = vld [vmem:[%s1211 + $0x38] sm:$0xf]
      %v1227 = vld [vmem:[%s1211 + $0x3c] sm:$0xf]
      %v1234 = vunpack.c.l.b16 %v1205
      %v1235 = vunpack.c.l.b16 %v1206
      %v1236 = vunpack.c.l.b16 %v1207
      %v1237 = vunpack.c.l.b16 %v1208
      %v1238 = vunpack.c.l.b16 %v1209
      %v1239 = vunpack.c.l.b16 %v1210
      %v1240 = vpack.c.b16 %v1235, %v1234
      %v1241 = vpack.c.b16 %v1237, %v1236
      %v1242 = vpack.c.b16 %v1239, %v1238
      %v1244 = vshrl.u32 %v1240, 16
      %v1246 = vshll.u32 %v1240, 16
      %v1248 = vrot.slane %v1246, 1
      %v1249 = vor.u32 %v1244, %v1248
      %v1251 = vshll.u32 %v1241, 16
      %v1253 = vrot.slane %v1251, 1
      %v1254 = vsel %vm823, %v1249, %v1253
      %v1255 = vshrl.u32 %v1241, 16
      %v1257 = vor.u32 %v1255, %v1253
      %v1259 = vshll.u32 %v1242, 16
      %v1261 = vrot.slane %v1259, 1
      %v1262 = vsel %vm823, %v1257, %v1261
      %v1263 = vshrl.u32 %v1242, 16
      %v1265 = vor.u32 %v1263, %v1261
      %v1285 = vunpack.c.l.b16 %v1212
      %v1286 = vunpack.c.l.b16 %v1213
      %v1287 = vunpack.c.l.b16 %v1214
      %v1288 = vunpack.c.l.b16 %v1215
      %v1289 = vunpack.c.l.b16 %v1216
      %v1290 = vunpack.c.l.b16 %v1217
      %v1291 = vunpack.c.l.b16 %v1218
      %v1292 = vunpack.c.l.b16 %v1219
      %v1293 = vunpack.c.l.b16 %v1220
      %v1294 = vunpack.c.l.b16 %v1221
      %v1295 = vunpack.c.l.b16 %v1222
      %v1296 = vunpack.c.l.b16 %v1223
      %v1297 = vunpack.c.l.b16 %v1224
      %v1298 = vunpack.c.l.b16 %v1225
      %v1299 = vunpack.c.l.b16 %v1226
      %v1300 = vunpack.c.l.b16 %v1227
      %v1301 = vpack.c.b16 %v1286, %v1285
      %v1302 = vpack.c.b16 %v1288, %v1287
      %v1303 = vpack.c.b16 %v1290, %v1289
      %v1304 = vpack.c.b16 %v1292, %v1291
      %v1305 = vpack.c.b16 %v1294, %v1293
      %v1306 = vpack.c.b16 %v1296, %v1295
      %v1307 = vpack.c.b16 %v1298, %v1297
      %v1308 = vpack.c.b16 %v1300, %v1299
      %1317 = vmatprep.subr.bf16.mxu0 0
      %1318 = vmatpush1.bf16.msra.mxu0 %v1308
      %1319 = vmatprep.subr.bf16.mxu0 0
      %1320 = vmatpush1.bf16.msra.mxu0 %v1307
      %1321 = vmatprep.subr.bf16.mxu0 0
      %1322 = vmatpush1.bf16.msra.mxu0 %v1306
      %1323 = vmatprep.subr.bf16.mxu0 0
      %1324 = vmatpush1.bf16.msra.mxu0 %v1305
      %1325 = vmatprep.subr.bf16.mxu0 0
      %1326 = vmatpush1.bf16.msra.mxu0 %v1304
      %1327 = vmatprep.subr.bf16.mxu0 0
      %1328 = vmatpush1.bf16.msra.mxu0 %v1303
      %1329 = vmatprep.subr.bf16.mxu0 0
      %1330 = vmatpush1.bf16.msra.mxu0 %v1302
      %1331 = vmatprep.subr.bf16.mxu0 0
      %1332 = vmatpush1.bf16.msra.mxu0 %v1301
      %1333 = vmatprep.subr.bf16.mxu0 0
      %1334 = vmatpush2.bf16.msra.mxu0 0
      %1335 = vmatprep.subr.bf16.mxu0 0
      %1336 = vmatpush2.bf16.msra.mxu0 0
      %1337 = vmatprep.subr.bf16.mxu0 0
      %1338 = vmatpush2.bf16.msra.mxu0 0
      %1339 = vmatprep.subr.bf16.mxu0 0
      %1340 = vmatpush2.bf16.msra.mxu0 0
      %1341 = vmatprep.subr.bf16.mxu0 0
      %1342 = vmatpush2.bf16.msra.mxu0 0
      %1343 = vmatprep.subr.bf16.mxu0 0
      %1344 = vmatpush2.bf16.msra.mxu0 0
      %1345 = vmatprep.subr.bf16.mxu0 0
      %1346 = vmatpush2.bf16.msra.mxu0 0
      %1347 = vmatprep.subr.bf16.mxu0 0
      %1348 = vmatpush2.bf16.msra.mxu0 0
      %1349 = vmatprep.mubr.bf16.mxu0 0
      %1350 = vmatmul.mubr.bf16.gmra.mxu0 %v1254
      %v1351 = vpop.f32.mrf.mxu0
      %v1352 = vadd.f32 0.0, %v1351
      %v1353 = vpop.f32.mrf.mxu0
      %v1354 = vpop.f32.mrf.mxu0
      %v1355 = vadd.f32 0.0, %v1354
      %v1356 = vpop.f32.mrf.mxu0
      %1357 = vmatprep.mubr.bf16.mxu0 0
      %1358 = vmatmul.mubr.bf16.gmra.mxu0 %v1262
      %v1359 = vpop.f32.mrf.mxu0
      %v1360 = vadd.f32 0.0, %v1359
      %v1361 = vpop.f32.mrf.mxu0
      %v1362 = vpop.f32.mrf.mxu0
      %v1363 = vadd.f32 0.0, %v1362
      %v1364 = vpop.f32.mrf.mxu0
      %1365 = vmatprep.mubr.bf16.mxu0 0
      %1366 = vmatmul.mubr.bf16.gmra.mxu0 %v1265
      %v1367 = vpop.f32.mrf.mxu0
      %v1368 = vadd.f32 0.0, %v1367
      %v1369 = vpop.f32.mrf.mxu0
      %v1370 = vpop.f32.mrf.mxu0
      %v1371 = vpop.f32.mrf.mxu0
      %1372 = vdwg.mxu0
      %v1373 = vadd.f32 %v1200, %v1352
      %v1374 = vadd.f32 %v1201, %v1355
      %v1375 = vadd.f32 %v1202, %v1360
      %v1376 = vadd.f32 %v1203, %v1363
      %v1377 = vadd.f32 %v1204, %v1368
      %v1378 = vld [vmem:[%s301 + $0x10] sm:$0xe]
      %v1379 = vld [vmem:[%s301 + $0x20] sm:$0xf]
      %v1380 = vld [vmem:[%s301 + $0x30] sm:$0xf]
      %v1381 = vld [vmem:[%s301 + $0x40] sm:$0xf]
      %v1382 = vld [vmem:[%s301 + $0x50] sm:$0xf]
      %v1383 = vld [vmem:[%s301 + $0x60] sm:$0x1]
      %s1384 = scalar_lea.vmem %s2, 128
      %v1385 = vld [vmem:[%s1384] sm:$0xf]
      %v1386 = vld [vmem:[%s1384 + $0x4] sm:$0xf]
      %v1387 = vld [vmem:[%s1384 + $0x8] sm:$0xf]
      %v1388 = vld [vmem:[%s1384 + $0xc] sm:$0xf]
      %v1389 = vld [vmem:[%s1384 + $0x10] sm:$0xf]
      %v1390 = vld [vmem:[%s1384 + $0x14] sm:$0xf]
      %v1391 = vld [vmem:[%s1384 + $0x18] sm:$0xf]
      %v1392 = vld [vmem:[%s1384 + $0x1c] sm:$0xf]
      %v1393 = vld [vmem:[%s1384 + $0x20] sm:$0xf]
      %v1394 = vld [vmem:[%s1384 + $0x24] sm:$0xf]
      %v1395 = vld [vmem:[%s1384 + $0x28] sm:$0xf]
      %v1396 = vld [vmem:[%s1384 + $0x2c] sm:$0xf]
      %v1397 = vld [vmem:[%s1384 + $0x30] sm:$0xf]
      %v1398 = vld [vmem:[%s1384 + $0x34] sm:$0xf]
      %v1399 = vld [vmem:[%s1384 + $0x38] sm:$0xf]
      %v1400 = vld [vmem:[%s1384 + $0x3c] sm:$0xf]
      %v1407 = vunpack.c.l.b16 %v1378
      %v1408 = vunpack.c.l.b16 %v1379
      %v1409 = vunpack.c.l.b16 %v1380
      %v1410 = vunpack.c.l.b16 %v1381
      %v1411 = vunpack.c.l.b16 %v1382
      %v1412 = vunpack.c.l.b16 %v1383
      %v1413 = vpack.c.b16 %v1408, %v1407
      %v1414 = vpack.c.b16 %v1410, %v1409
      %v1415 = vpack.c.b16 %v1412, %v1411
      %vm1416 = vcmask 1046528
      %v1417 = vrot.slane %v1413, 1
      %v1418 = vrot.slane %v1414, 1
      %v1419 = vsel %vm1416, %v1417, %v1418
      %v1420 = vrot.slane %v1415, 1
      %v1421 = vsel %vm1416, %v1418, %v1420
      %v1441 = vunpack.c.l.b16 %v1385
      %v1442 = vunpack.c.l.b16 %v1386
      %v1443 = vunpack.c.l.b16 %v1387
      %v1444 = vunpack.c.l.b16 %v1388
      %v1445 = vunpack.c.l.b16 %v1389
      %v1446 = vunpack.c.l.b16 %v1390
      %v1447 = vunpack.c.l.b16 %v1391
      %v1448 = vunpack.c.l.b16 %v1392
      %v1449 = vunpack.c.l.b16 %v1393
      %v1450 = vunpack.c.l.b16 %v1394
      %v1451 = vunpack.c.l.b16 %v1395
      %v1452 = vunpack.c.l.b16 %v1396
      %v1453 = vunpack.c.l.b16 %v1397
      %v1454 = vunpack.c.l.b16 %v1398
      %v1455 = vunpack.c.l.b16 %v1399
      %v1456 = vunpack.c.l.b16 %v1400
      %v1457 = vpack.c.b16 %v1442, %v1441
      %v1458 = vpack.c.b16 %v1444, %v1443
      %v1459 = vpack.c.b16 %v1446, %v1445
      %v1460 = vpack.c.b16 %v1448, %v1447
      %v1461 = vpack.c.b16 %v1450, %v1449
      %v1462 = vpack.c.b16 %v1452, %v1451
      %v1463 = vpack.c.b16 %v1454, %v1453
      %v1464 = vpack.c.b16 %v1456, %v1455
      %1473 = vmatprep.subr.bf16.mxu0 0
      %1474 = vmatpush1.bf16.msra.mxu0 %v1464
      %1475 = vmatprep.subr.bf16.mxu0 0
      %1476 = vmatpush1.bf16.msra.mxu0 %v1463
      %1477 = vmatprep.subr.bf16.mxu0 0
      %1478 = vmatpush1.bf16.msra.mxu0 %v1462
      %1479 = vmatprep.subr.bf16.mxu0 0
      %1480 = vmatpush1.bf16.msra.mxu0 %v1461
      %1481 = vmatprep.subr.bf16.mxu0 0
      %1482 = vmatpush1.bf16.msra.mxu0 %v1460
      %1483 = vmatprep.subr.bf16.mxu0 0
      %1484 = vmatpush1.bf16.msra.mxu0 %v1459
      %1485 = vmatprep.subr.bf16.mxu0 0
      %1486 = vmatpush1.bf16.msra.mxu0 %v1458
      %1487 = vmatprep.subr.bf16.mxu0 0
      %1488 = vmatpush1.bf16.msra.mxu0 %v1457
      %1489 = vmatprep.subr.bf16.mxu0 0
      %1490 = vmatpush2.bf16.msra.mxu0 0
      %1491 = vmatprep.subr.bf16.mxu0 0
      %1492 = vmatpush2.bf16.msra.mxu0 0
      %1493 = vmatprep.subr.bf16.mxu0 0
      %1494 = vmatpush2.bf16.msra.mxu0 0
      %1495 = vmatprep.subr.bf16.mxu0 0
      %1496 = vmatpush2.bf16.msra.mxu0 0
      %1497 = vmatprep.subr.bf16.mxu0 0
      %1498 = vmatpush2.bf16.msra.mxu0 0
      %1499 = vmatprep.subr.bf16.mxu0 0
      %1500 = vmatpush2.bf16.msra.mxu0 0
      %1501 = vmatprep.subr.bf16.mxu0 0
      %1502 = vmatpush2.bf16.msra.mxu0 0
      %1503 = vmatprep.subr.bf16.mxu0 0
      %1504 = vmatpush2.bf16.msra.mxu0 0
      %1505 = vmatprep.mubr.bf16.mxu0 0
      %1506 = vmatmul.mubr.bf16.gmra.mxu0 %v1419
      %v1507 = vpop.f32.mrf.mxu0
      %v1508 = vadd.f32 0.0, %v1507
      %v1509 = vpop.f32.mrf.mxu0
      %v1510 = vpop.f32.mrf.mxu0
      %v1511 = vadd.f32 0.0, %v1510
      %v1512 = vpop.f32.mrf.mxu0
      %1513 = vmatprep.mubr.bf16.mxu0 0
      %1514 = vmatmul.mubr.bf16.gmra.mxu0 %v1421
      %v1515 = vpop.f32.mrf.mxu0
      %v1516 = vadd.f32 0.0, %v1515
      %v1517 = vpop.f32.mrf.mxu0
      %v1518 = vpop.f32.mrf.mxu0
      %v1519 = vadd.f32 0.0, %v1518
      %v1520 = vpop.f32.mrf.mxu0
      %1521 = vmatprep.mubr.bf16.mxu0 0
      %1522 = vmatmul.mubr.bf16.gmra.mxu0 %v1420
      %v1523 = vpop.f32.mrf.mxu0
      %v1524 = vadd.f32 0.0, %v1523
      %v1525 = vpop.f32.mrf.mxu0
      %v1526 = vpop.f32.mrf.mxu0
      %v1527 = vpop.f32.mrf.mxu0
      %1528 = vdwg.mxu0
      %v1529 = vadd.f32 %v1373, %v1508
      %v1530 = vadd.f32 %v1374, %v1511
      %v1531 = vadd.f32 %v1375, %v1516
      %v1532 = vadd.f32 %v1376, %v1519
      %v1533 = vadd.f32 %v1377, %v1524
      %v1534 = vpack.c.bf16 %v1530, %v1529
      %v1535 = vpack.c.bf16 %v1532, %v1531
      %v1536 = vpack.c.bf16 %v1533, %v1533
      %v1540 = vunpack.c.l.b16 %v1534
      %v1541 = vunpack.c.h.b16 %v1534
      %v1542 = vunpack.c.l.b16 %v1535
      %v1543 = vunpack.c.h.b16 %v1535
      %v1544 = vunpack.c.l.b16 %v1536
      %v1545 = vpack.c.b16 %v1540, %v1540
      %v1546 = vpack.c.b16 %v1541, %v1541
      %v1547 = vpack.c.b16 %v1542, %v1542
      %v1548 = vpack.c.b16 %v1543, %v1543
      %v1549 = vpack.c.b16 %v1544, %v1544
      %1555 = vst [vmem:[%s310] sm:$0xf] %v1545
      %1556 = vst [vmem:[%s310 + $0x4] sm:$0xf] %v1546
      %1557 = vst [vmem:[%s310 + $0x8] sm:$0xf] %v1547
      %1558 = vst [vmem:[%s310 + $0xc] sm:$0xf] %v1548
      %1559 = vst [vmem:[%s310 + $0x10] sm:$0xf] %v1549
      %v1560 = vld [vmem:[%s3] sm:$0xff]
      %v1561 = vld [vmem:[%s3 + $0x8] sm:$0xff]
      %v1562 = vld [vmem:[%s3 + $0x10] sm:$0xff]
      %v1563 = vld [vmem:[%s3 + $0x18] sm:$0xff]
      %v1564 = vld [vmem:[%s3 + $0x20] sm:$0xff]
      %1566 = vset.pattern.permute.xlu0 0
      %1567 = vperm.xlu0 %1566, %v1560
      %v1568 = vpop.permute.xlu0 %1567
      %1571 = vset.pattern.permute.xlu0 0
      %1572 = vperm.xlu0 %1571, %v1561
      %v1573 = vpop.permute.xlu0 %1572
      %1576 = vset.pattern.permute.xlu0 0
      %1577 = vperm.xlu0 %1576, %v1562
      %v1578 = vpop.permute.xlu0 %1577
      %1581 = vset.pattern.permute.xlu0 0
      %1582 = vperm.xlu0 %1581, %v1563
      %v1583 = vpop.permute.xlu0 %1582
      %1586 = vset.pattern.permute.xlu0 0
      %1587 = vperm.xlu0 %1586, %v1564
      %v1588 = vpop.permute.xlu0 %1587
      %v1590 = vmul.f32 %v1529, %v1568
      %v1591 = vmul.f32 %v1530, %v1573
      %v1592 = vmul.f32 %v1531, %v1578
      %v1593 = vmul.f32 %v1532, %v1583
      %v1594 = vmul.f32 %v1533, %v1588
      %v1595 = vadd.f32 %v1590, %v1591
      %v1596 = vadd.f32 %v1595, %v1592
      %v1597 = vadd.f32 %v1596, %v1593
      %v1598 = vadd.f32 %v1597, %v1594
      %v1599 = vrot.slane %v1598, 4
      %v1600 = vadd.f32 %v1598, %v1599
      %v1601 = vrot.slane %v1600, 2
      %v1602 = vadd.f32 %v1600, %v1601
      %v1603 = vrot.slane %v1602, 1
      %v1604 = vadd.f32 %v1602, %v1603
      %1605 = vst [vmem:[%s318] sm:$0x1] %v1604
      %v1606 = vmul.f32 %v1590, %v1529
      %v1607 = vmul.f32 %v1591, %v1530
      %v1608 = vmul.f32 %v1592, %v1531
      %v1609 = vmul.f32 %v1593, %v1532
      %v1610 = vmul.f32 %v1594, %v1533
      %v1611 = vadd.f32 %v1606, %v1607
      %v1612 = vadd.f32 %v1611, %v1608
      %v1613 = vadd.f32 %v1612, %v1609
      %v1614 = vadd.f32 %v1613, %v1610
      %v1615 = vrot.slane %v1614, 4
      %v1616 = vadd.f32 %v1614, %v1615
      %v1617 = vrot.slane %v1616, 2
      %v1618 = vadd.f32 %v1616, %v1617
      %v1619 = vrot.slane %v1618, 1
      %v1620 = vadd.f32 %v1618, %v1619
      %1621 = vst [vmem:[%s325] sm:$0x1] %v1620
      %s1622 = smul.u32 5, %s23
      %p1623 = scmp.lt.s32.totalorder %s22, 1
      %s1624 = scalar_select %p1623, %s22, 1
      %p1625 = scmp.lt.s32.totalorder %s1622, 9
      %s1626 = scalar_select %p1625, %s1622, 9
      %s1627 = smul.addr %s1624, 10
      %s1628 = sadd.s32 %s1626, %s1627
      %s1629 = smul.addr %s1628, 4
      %s1630 = scalar_lea.vmem %s4, %s1629
      %p1631 = scmp.lt.s32.totalorder %s22, 1
      %s1632 = scalar_select %p1631, %s22, 1
      %p1633 = scmp.lt.s32.totalorder %s23, 1
      %s1634 = scalar_select %p1633, %s23, 1
      %s1635 = smul.addr %s1632, 2
      %s1636 = sadd.s32 %s1634, %s1635
      %s1637 = scalar_lea.vmem %s5, %s1636
      %p1638 = scmp.lt.s32.totalorder %s22, 1
      %s1639 = scalar_select %p1638, %s22, 1
      %p1640 = scmp.lt.s32.totalorder %s23, 1
      %s1641 = scalar_select %p1640, %s23, 1
      %s1642 = smul.addr %s1639, 2
      %s1643 = sadd.s32 %s1641, %s1642
      %s1644 = scalar_lea.vmem %s6, %s1643
      // Predicated region
      $region37: #{relu_conv_bn_relu_conv.2} parent=35 // pred_check
        %p1645 = pneg %p141
      $region38: #{relu_conv_bn_relu_conv.2} parent=35 // pred_check_branch
        %1647 = sbr.rel (%p1645) target = $region40
      $region39: #{relu_conv_bn_relu_conv.2} parent=35 // pred_region
        %s1648 = smul.u32 5, %s23
      $region40: #{relu_conv_bn_relu_conv.2} parent=35 // pred_fallthru
        _
      // Predicated region
      $region41: #{relu_conv_bn_relu_conv.2} parent=35 // pred_check
        %p1649 = pneg %p169
      $region42: #{relu_conv_bn_relu_conv.2} parent=35 // pred_check_branch
        %1651 = sbr.rel (%p1649) target = $region44
      $region43: #{relu_conv_bn_relu_conv.2} parent=35 // pred_region
        _
      $region44: #{relu_conv_bn_relu_conv.2} parent=35 // pred_fallthru
        _
      // Predicated region
      $region45: #{relu_conv_bn_relu_conv.2} parent=35 // pred_check
        %p1652 = pneg %p197
      $region46: #{relu_conv_bn_relu_conv.2} parent=35 // pred_check_branch
        %1654 = sbr.rel (%p1652) target = $region48
      $region47: #{relu_conv_bn_relu_conv.2} parent=35 // pred_region
        _
      $region48: #{relu_conv_bn_relu_conv.2} parent=35 // pred_fallthru
        _
    $region36: #{relu_conv_bn_relu_conv.2} parent=5 // pred_fallthru
      _
    %p1655 = scmp.le.s32.totalorder 2, %s13
    // Predicated region
    $region49: #{relu_conv_bn_relu_conv.2} parent=5 // pred_check
      %p1656 = pneg %p1655
    $region50: #{relu_conv_bn_relu_conv.2} parent=5 // pred_check_branch
      %1658 = sbr.rel (%p1656) target = $region52
    $region51: #{relu_conv_bn_relu_conv.2} parent=5 // pred_region
      %s1659 = ssub.s32 %s13, 2
      // Predicated region
      $region53: #{relu_conv_bn_relu_conv.2} parent=51 // pred_check
        %p1660 = pneg %p147
      $region54: #{relu_conv_bn_relu_conv.2} parent=51 // pred_check_branch
        %1662 = sbr.rel (%p1660) target = $region56
      $region55: #{relu_conv_bn_relu_conv.2} parent=51 // pred_region
        %s1663 = smul.u32 5, %s25
        %p1664 = scmp.lt.s32.totalorder %s24, 1
        %s1665 = scalar_select %p1664, %s24, 1
        %p1666 = scmp.lt.s32.totalorder %s1663, 9
        %s1667 = scalar_select %p1666, %s1663, 9
        %s1668 = smul.addr %s1665, 10
        %s1669 = sadd.s32 %s1667, %s1668
        %s1670 = smul.addr %s1669, 4
        %s1671 = scalar_lea.vmem %s4, %s1670
      $region56: #{relu_conv_bn_relu_conv.2} parent=51 // pred_fallthru
        _
      // Predicated region
      $region57: #{relu_conv_bn_relu_conv.2} parent=51 // pred_check
        %p1672 = pneg %p175
      $region58: #{relu_conv_bn_relu_conv.2} parent=51 // pred_check_branch
        %1674 = sbr.rel (%p1672) target = $region60
      $region59: #{relu_conv_bn_relu_conv.2} parent=51 // pred_region
        %p1675 = scmp.lt.s32.totalorder %s24, 1
        %s1676 = scalar_select %p1675, %s24, 1
        %p1677 = scmp.lt.s32.totalorder %s25, 1
        %s1678 = scalar_select %p1677, %s25, 1
        %s1679 = smul.addr %s1676, 2
        %s1680 = sadd.s32 %s1678, %s1679
        %s1681 = scalar_lea.vmem %s5, %s1680
      $region60: #{relu_conv_bn_relu_conv.2} parent=51 // pred_fallthru
        _
      // Predicated region
      $region61: #{relu_conv_bn_relu_conv.2} parent=51 // pred_check
        %p1682 = pneg %p203
      $region62: #{relu_conv_bn_relu_conv.2} parent=51 // pred_check_branch
        %1684 = sbr.rel (%p1682) target = $region64
      $region63: #{relu_conv_bn_relu_conv.2} parent=51 // pred_region
        %p1685 = scmp.lt.s32.totalorder %s24, 1
        %s1686 = scalar_select %p1685, %s24, 1
        %p1687 = scmp.lt.s32.totalorder %s25, 1
        %s1688 = scalar_select %p1687, %s25, 1
        %s1689 = smul.addr %s1686, 2
        %s1690 = sadd.s32 %s1688, %s1689
        %s1691 = scalar_lea.vmem %s6, %s1690
      $region64: #{relu_conv_bn_relu_conv.2} parent=51 // pred_fallthru
        _
    $region52: #{relu_conv_bn_relu_conv.2} parent=5 // pred_fallthru
      _
  $region6: #{relu_conv_bn_relu_conv.2} parent=0 // loop_footer
    %s17 = sadd.s32 1, %s13
  $region7: #{relu_conv_bn_relu_conv.2} parent=0 // loop_footer_branch
    %12 = sbr.rel target = $region3
  $region8: #{relu_conv_bn_relu_conv.2} parent=0 // loop_exit
    _

</llo_original>
